<compile_context>
chip_gen: v6e
topology: v6e:2x2x1
jax: 0.10.0
libtpu: 0.0.40
codegen_flags: <defaults>
</compile_context>

<pallas_src>
import functools
import math

import jax
import jax.numpy as jnp
from jax.experimental import pallas as pl
from jax.experimental.pallas import tpu as pltpu

# ----------------------------- model config ---------------------------------
B = 2            # batch
P = 4            # image prefix length
T = 8            # text sequence length
IMG_DIM = 48     # image_embed_dim
D = 64           # qwen_embed_dim (hidden)
VOCAB = 128
N_LAYERS = 2
N_HEADS = 2
HEAD_DIM = 32
MLP_DIM = 128
EPS = 1e-6
NEG_INF = -1e9


# ------------------------------ fused Pallas kernel --------------------------
def _fused_kernel(img_ref, tok_ref, valid_ref,
                  imgw_ref, imgb_ref,
                  ln1_ref, wqkv_ref, bqkv_ref, wo_ref,
                  ln2_ref, wgu_ref, wd_ref,
                  fnorm_ref, lmhead_ref,
                  out_ref, *,
                  batch, prefix_pad, text_pad, s_per_b, log2_s,
                  n_layers, n_heads, head_dim, mlp_dim, eps):
    rows = batch * s_per_b
    hq = n_heads * head_dim
    d_model = tok_ref.shape[-1]
    trail = s_per_b - prefix_pad - text_pad
    scale = 1.0 / math.sqrt(head_dim)

    # ---- image prefix projection (pad rows are zero -> bias-only, masked) ---
    img_tok = jnp.dot(img_ref[...], imgw_ref[...],
                      preferred_element_type=jnp.float32) + imgb_ref[...]

    # ---- assemble flattened [B*s_per_b, D]: per batch [prefix | text | pad] --
    tok = tok_ref[...]
    pieces = []
    for b in range(batch):
        pieces.append(img_tok[b * prefix_pad:(b + 1) * prefix_pad, :])
        pieces.append(tok[b * text_pad:(b + 1) * text_pad, :])
        if trail:
            pieces.append(jnp.zeros((trail, d_model), jnp.float32))
    h = jnp.concatenate(pieces, axis=0)                              # [rows, D]

    # ---- block-diagonal causal + padding mask, built in-VMEM ----------------
    ri = jax.lax.broadcasted_iota(jnp.int32, (rows, rows), 0)
    rj = jax.lax.broadcasted_iota(jnp.int32, (rows, rows), 1)
    same_batch = jnp.right_shift(ri, log2_s) == jnp.right_shift(rj, log2_s)
    causal = jnp.bitwise_and(rj, s_per_b - 1) <= jnp.bitwise_and(ri, s_per_b - 1)
    keep = same_batch & causal & (valid_ref[...] > 0.0)              # [rows, rows]
    add_mask = jnp.where(keep, 0.0, NEG_INF).astype(jnp.float32)

    def rms(x, w):  # f32 norm math on all chips
        var = jnp.mean(x * x, axis=-1, keepdims=True)
        return x * jax.lax.rsqrt(var + eps) * w

    # ---- decoder layers (unrolled; weights resident in VMEM) ----------------
    for l in range(n_layers):
        # attention block: RMSNorm fused into the fused QKV matmul
        x = rms(h, ln1_ref[l])
        qkv = jnp.dot(x.astype(jnp.bfloat16), wqkv_ref[l],
                      preferred_element_type=jnp.float32) + bqkv_ref[l]
        qkv_b = qkv.astype(jnp.bfloat16)
        q_all = qkv_b[:, :hq]                     # Q/K/V split hoisted out of
        k_all = qkv_b[:, hq:2 * hq]               # the head loop
        v_all = qkv_b[:, 2 * hq:]
        head_outs = []
        for hh in range(n_heads):
            sl = slice(hh * head_dim, (hh + 1) * head_dim)
            q, k, v = q_all[:, sl], k_all[:, sl], v_all[:, sl]
            s = jax.lax.dot_general(q, k, (((1,), (1,)), ((), ())),
                                    preferred_element_type=jnp.float32)
            s = s * scale + add_mask
            s = s - jnp.max(s, axis=-1, keepdims=True)
            p = jnp.exp(s)
            p = p * pl.reciprocal(jnp.sum(p, axis=-1, keepdims=True), approx=False)
            head_outs.append(jnp.dot(p.astype(jnp.bfloat16), v,
                                     preferred_element_type=jnp.float32))
        attn = jnp.concatenate(head_outs, axis=1)                    # [rows, hq]
        h = h + jnp.dot(attn.astype(jnp.bfloat16), wo_ref[l],        # single wo matmul
                        preferred_element_type=jnp.float32)

        # MLP block: RMSNorm fused into gate|up matmul; SwiGLU fused with down
        x = rms(h, ln2_ref[l])
        gu = jnp.dot(x.astype(jnp.bfloat16), wgu_ref[l],
                     preferred_element_type=jnp.float32)
        g = gu[:, :mlp_dim]
        u = gu[:, mlp_dim:]
        m = g * jax.nn.sigmoid(g) * u
        h = h + jnp.dot(m.astype(jnp.bfloat16), wd_ref[l],
                        preferred_element_type=jnp.float32)

    # ---- final norm + lm_head on TEXT rows only ------------------------------
    text = jnp.concatenate(
        [h[b * s_per_b + prefix_pad: b * s_per_b + prefix_pad + text_pad, :]
         for b in range(batch)], axis=0)                             # [B*Tpad, D]
    x = rms(text, fnorm_ref[...])
    out_ref[...] = jnp.dot(x.astype(jnp.bfloat16), lmhead_ref[...],
                           preferred_element_type=jnp.float32).astype(out_ref.dtype)


def _round_up(x, m):
    return ((x + m - 1) // m) * m


# ------------------------------ model wrapper --------------------------------
def qwen_with_image_prefix(params, image_embeds, input_ids, attention_mask):
    Bm, prefix_len, img_dim = image_embeds.shape
    Tm = input_ids.shape[1]
    Dm = params["img_proj_w"].shape[1]
    vocab = params["lm_head"].shape[1]

    prefix_pad = _round_up(prefix_len, 8)          # sublane-align prefix slots
    text_pad = _round_up(Tm, 8)                    # sublane-align text slots
    s_per_b = 1 << (prefix_pad + text_pad - 1).bit_length()  # pow2 for shift decode
    log2_s = s_per_b.bit_length() - 1
    trail = s_per_b - prefix_pad - text_pad

    # --- plain-JAX glue: embedding gather + tiny alignment pads --------------
    tok_emb = jnp.take(params["embed_tokens"], input_ids, axis=0)    # [B,T,D]
    if text_pad > Tm:
        tok_emb = jnp.pad(tok_emb, ((0, 0), (0, text_pad - Tm), (0, 0)))
    tok_flat = tok_emb.reshape(Bm * text_pad, Dm)                    # [B*Tpad, D]

    img = image_embeds
    if prefix_pad > prefix_len:
        img = jnp.pad(img, ((0, 0), (0, prefix_pad - prefix_len), (0, 0)))
    img_flat = img.reshape(Bm * prefix_pad, img_dim).astype(jnp.bfloat16)

    # per-key validity vector over the padded flattened layout
    valid = jnp.concatenate([
        jnp.ones((Bm, prefix_len), jnp.float32),
        jnp.zeros((Bm, prefix_pad - prefix_len), jnp.float32),
        attention_mask.astype(jnp.float32),
        jnp.zeros((Bm, text_pad - Tm), jnp.float32),
        jnp.zeros((Bm, trail), jnp.float32),
    ], axis=1).reshape(1, Bm * s_per_b)

    bf = lambda a: a.astype(jnp.bfloat16)          # matmul-operand weights in bf16

    kernel = functools.partial(
        _fused_kernel, batch=Bm, prefix_pad=prefix_pad, text_pad=text_pad,
        s_per_b=s_per_b, log2_s=log2_s, n_layers=N_LAYERS, n_heads=N_HEADS,
        head_dim=HEAD_DIM, mlp_dim=MLP_DIM, eps=EPS)

    # Single invocation, no grid: every operand is a whole-array VMEM block,
    # weights resident for the entire forward pass.
    logits_flat = pl.pallas_call(
        kernel,
        out_shape=jax.ShapeDtypeStruct((Bm * text_pad, vocab), jnp.float32),
    )(img_flat, tok_flat, valid,
      bf(params["img_proj_w"]), params["img_proj_b"],
      params["ln1"], bf(params["wqkv"]), params["bqkv"], bf(params["wo"]),
      params["ln2"], bf(params["wgu"]), bf(params["wd"]),
      params["final_norm"], bf(params["lm_head"]))

    # outputs.logits[:, prefix_len:, :]  (text rows only were ever computed)
    return logits_flat.reshape(Bm, text_pad, vocab)[:, :Tm, :]


# ------------------------------ pure-JAX reference ---------------------------
def reference_forward(params, image_embeds, input_ids, attention_mask):
    Bm, prefix_len, _ = image_embeds.shape
    img_tokens = image_embeds @ params["img_proj_w"] + params["img_proj_b"][0]
    tok = jnp.take(params["embed_tokens"], input_ids, axis=0)
    h = jnp.concatenate([img_tokens, tok], axis=1)
    S_ = h.shape[1]
    full_mask = jnp.concatenate(
        [jnp.ones((Bm, prefix_len), attention_mask.dtype), attention_mask], axis=1)
    causal = jnp.tril(jnp.ones((S_, S_), bool))
    keep = causal[None] & (full_mask[:, None, :] > 0)
    add_mask = jnp.where(keep, 0.0, NEG_INF)
    scale = 1.0 / math.sqrt(HEAD_DIM)

    def rms(x, w):
        return x * jax.lax.rsqrt(jnp.mean(x * x, -1, keepdims=True) + EPS) * w

    def heads(y):
        return y.reshape(Bm, S_, N_HEADS, HEAD_DIM).transpose(0, 2, 1, 3)

    for l in range(N_LAYERS):
        x = rms(h, params["ln1"][l, 0])
        qkv = x @ params["wqkv"][l] + params["bqkv"][l, 0]
        q, k, v = jnp.split(qkv, 3, axis=-1)
        q, k, v = heads(q), heads(k), heads(v)
        s = jnp.einsum("bhqd,bhkd->bhqk", q, k) * scale + add_mask[:, None]
        p = jax.nn.softmax(s, axis=-1)
        o = jnp.einsum("bhqk,bhkd->bhqd", p, v)
        o = o.transpose(0, 2, 1, 3).reshape(Bm, S_, N_HEADS * HEAD_DIM)
        h = h + o @ params["wo"][l]
        x = rms(h, params["ln2"][l, 0])
        gu = x @ params["wgu"][l]
        g, u = gu[..., :MLP_DIM], gu[..., MLP_DIM:]
        h = h + (g * jax.nn.sigmoid(g) * u) @ params["wd"][l]

    x = rms(h, params["final_norm"][0])
    logits = x @ params["lm_head"]
    return logits[:, prefix_len:, :]


# ------------------------------ params ---------------------------------------
def init_params(key):
    def nrm(k, shape):
        return 0.02 * jax.random.normal(k, shape, dtype=jnp.float32)

    keys = jax.random.split(key, 3 + N_LAYERS * 7)
    params = {
        "img_proj_w": nrm(keys[0], (IMG_DIM, D)),
        "img_proj_b": jnp.zeros((1, D), jnp.float32),
        "embed_tokens": nrm(keys[1], (VOCAB, D)),
        "lm_head": nrm(keys[2], (D, VOCAB)),
        "final_norm": jnp.ones((1, D), jnp.float32),
    }
    ln1, ln2, wqkv, bqkv, wo, wgu, wd = [], [], [], [], [], [], []
    for l in range(N_LAYERS):
        kk = keys[3 + l * 7: 3 + (l + 1) * 7]
        wq = nrm(kk[0], (D, N_HEADS * HEAD_DIM))
        wk = nrm(kk[1], (D, N_HEADS * HEAD_DIM))
        wv = nrm(kk[2], (D, N_HEADS * HEAD_DIM))
        wqkv.append(jnp.concatenate([wq, wk, wv], axis=1))        # [D, 3*H*Dh]
        bqkv.append(jnp.zeros((1, 3 * N_HEADS * HEAD_DIM), jnp.float32))
        wo.append(nrm(kk[3], (N_HEADS * HEAD_DIM, D)))
        wg = nrm(kk[4], (D, MLP_DIM))
        wu = nrm(kk[5], (D, MLP_DIM))
        wgu.append(jnp.concatenate([wg, wu], axis=1))             # [D, 2*MLP]
        wd.append(nrm(kk[6], (MLP_DIM, D)))
        ln1.append(jnp.ones((1, D), jnp.float32))
        ln2.append(jnp.ones((1, D), jnp.float32))
    params["ln1"] = jnp.stack(ln1)       # [L, 1, D]
    params["ln2"] = jnp.stack(ln2)
    params["wqkv"] = jnp.stack(wqkv)     # [L, D, 3*H*Dh]
    params["bqkv"] = jnp.stack(bqkv)     # [L, 1, 3*H*Dh]
    params["wo"] = jnp.stack(wo)         # [L, H*Dh, D]
    params["wgu"] = jnp.stack(wgu)       # [L, D, 2*MLP]
    params["wd"] = jnp.stack(wd)         # [L, MLP, D]
    return params


# ------------------------------ main -----------------------------------------
if __name__ == "__main__":
    root = jax.random.PRNGKey(0)
    k_par, k_img, k_ids = jax.random.split(root, 3)

    params = init_params(k_par)
    image_embeds = jax.random.normal(k_img, (B, P, IMG_DIM), dtype=jnp.float32)
    input_ids = jax.random.randint(k_ids, (B, T), 0, VOCAB, dtype=jnp.int32)
    attention_mask = jnp.ones((B, T), dtype=jnp.int32).at[1, -2:].set(0)

    fwd = jax.jit(qwen_with_image_prefix)
    out = jax.block_until_ready(fwd(params, image_embeds, input_ids, attention_mask))

    assert out.shape == (B, T, VOCAB), out.shape
    assert bool(jnp.all(jnp.isfinite(out)))

    ref = reference_forward(params, image_embeds, input_ids, attention_mask)
    max_diff = float(jnp.max(jnp.abs(out - ref)))
    assert max_diff < 2e-2, f"mismatch vs reference: {max_diff}"

    print("KERNEL_OK")
</pallas_src>

<mosaic_0001>
module attributes {stable_mosaic.version = 11 : i64} {
  func.func @_fused_kernel(%arg0: memref<16x48xbf16, #tpu.memory_space<vmem>>, %arg1: memref<16x64xf32, #tpu.memory_space<vmem>>, %arg2: memref<1x32xf32, #tpu.memory_space<vmem>>, %arg3: memref<48x64xbf16, #tpu.memory_space<vmem>>, %arg4: memref<1x64xf32, #tpu.memory_space<vmem>>, %arg5: memref<2x1x64xf32, #tpu.memory_space<vmem>>, %arg6: memref<2x64x192xbf16, #tpu.memory_space<vmem>>, %arg7: memref<2x1x192xf32, #tpu.memory_space<vmem>>, %arg8: memref<2x64x64xbf16, #tpu.memory_space<vmem>>, %arg9: memref<2x1x64xf32, #tpu.memory_space<vmem>>, %arg10: memref<2x64x256xbf16, #tpu.memory_space<vmem>>, %arg11: memref<2x128x64xbf16, #tpu.memory_space<vmem>>, %arg12: memref<1x64xf32, #tpu.memory_space<vmem>>, %arg13: memref<64x128xbf16, #tpu.memory_space<vmem>>, %arg14: memref<16x128xf32, #tpu.memory_space<vmem>>) attributes {dimension_semantics = [], scalar_prefetch = 0 : i64, scratch_operands = 0 : i64, tpu.core_type = #tpu.core_type<tc>} {
    %c0 = arith.constant 0 : index
    %c0_0 = arith.constant 0 : index
    %0 = vector.load %arg0[%c0, %c0_0] : memref<16x48xbf16, #tpu.memory_space<vmem>>, vector<16x48xbf16>
    %c0_1 = arith.constant 0 : index
    %c0_2 = arith.constant 0 : index
    %1 = vector.load %arg3[%c0_1, %c0_2] : memref<48x64xbf16, #tpu.memory_space<vmem>>, vector<48x64xbf16>
    %cst = arith.constant dense<0.000000e+00> : vector<16x64xf32>
    %2 = tpu.matmul %0, %1, %cst {dimension_numbers = #tpu.dot_dimension_numbers<[1], [0], [0], [1], [0, 0, 1, 1], [], []>} : vector<16x48xbf16>, vector<48x64xbf16>, vector<16x64xf32> -> vector<16x64xf32>
    %c0_3 = arith.constant 0 : index
    %c0_4 = arith.constant 0 : index
    %3 = vector.load %arg4[%c0_3, %c0_4] : memref<1x64xf32, #tpu.memory_space<vmem>>, vector<1x64xf32>
    %4 = vector.broadcast %3 : vector<1x64xf32> to vector<16x64xf32>
    %5 = arith.addf %2, %4 : vector<16x64xf32>
    %c0_5 = arith.constant 0 : index
    %c0_6 = arith.constant 0 : index
    %6 = vector.load %arg1[%c0_5, %c0_6] : memref<16x64xf32, #tpu.memory_space<vmem>>, vector<16x64xf32>
    %7 = vector.extract_strided_slice %5 {offsets = [0, 0], sizes = [8, 64], strides = [1, 1]} : vector<16x64xf32> to vector<8x64xf32>
    %8 = vector.extract_strided_slice %6 {offsets = [0, 0], sizes = [8, 64], strides = [1, 1]} : vector<16x64xf32> to vector<8x64xf32>
    %9 = vector.extract_strided_slice %5 {offsets = [8, 0], sizes = [8, 64], strides = [1, 1]} : vector<16x64xf32> to vector<8x64xf32>
    %10 = vector.extract_strided_slice %6 {offsets = [8, 0], sizes = [8, 64], strides = [1, 1]} : vector<16x64xf32> to vector<8x64xf32>
    %11 = tpu.concatenate %7, %8, %9, %10 in 0 : vector<8x64xf32>, vector<8x64xf32>, vector<8x64xf32>, vector<8x64xf32> -> vector<32x64xf32>
    %12 = tpu.iota {dimensions = array<i32: 0>} : vector<32x32xi32>
    %13 = tpu.iota {dimensions = array<i32: 1>} : vector<32x32xi32>
    %c4_i32 = arith.constant 4 : i32
    %14 = vector.broadcast %c4_i32 : i32 to vector<32x32xi32>
    %15 = arith.shrsi %12, %14 : vector<32x32xi32>
    %c4_i32_7 = arith.constant 4 : i32
    %16 = vector.broadcast %c4_i32_7 : i32 to vector<32x32xi32>
    %17 = arith.shrsi %13, %16 : vector<32x32xi32>
    %18 = arith.cmpi eq, %15, %17 : vector<32x32xi32>
    %c15_i32 = arith.constant 15 : i32
    %19 = vector.broadcast %c15_i32 : i32 to vector<32x32xi32>
    %20 = arith.andi %13, %19 : vector<32x32xi32>
    %c15_i32_8 = arith.constant 15 : i32
    %21 = vector.broadcast %c15_i32_8 : i32 to vector<32x32xi32>
    %22 = arith.andi %12, %21 : vector<32x32xi32>
    %23 = arith.cmpi sle, %20, %22 : vector<32x32xi32>
    %24 = arith.andi %18, %23 : vector<32x32xi1>
    %c0_9 = arith.constant 0 : index
    %c0_10 = arith.constant 0 : index
    %25 = vector.load %arg2[%c0_9, %c0_10] : memref<1x32xf32, #tpu.memory_space<vmem>>, vector<1x32xf32>
    %cst_11 = arith.constant 0.000000e+00 : f32
    %26 = vector.broadcast %cst_11 : f32 to vector<1x32xf32>
    %27 = arith.cmpf ogt, %25, %26 : vector<1x32xf32>
    %28 = vector.broadcast %27 : vector<1x32xi1> to vector<32x32xi1>
    %29 = arith.andi %24, %28 : vector<32x32xi1>
    %cst_12 = arith.constant 0.000000e+00 : f32
    %cst_13 = arith.constant -1.000000e+09 : f32
    %30 = vector.broadcast %cst_12 : f32 to vector<32x32xf32>
    %31 = vector.broadcast %cst_13 : f32 to vector<32x32xf32>
    %32 = arith.select %29, %30, %31 : vector<32x32xi1>, vector<32x32xf32>
    %c0_14 = arith.constant 0 : index
    %c0_15 = arith.constant 0 : index
    %c0_16 = arith.constant 0 : index
    %33 = vector.load %arg5[%c0_14, %c0_15, %c0_16] : memref<2x1x64xf32, #tpu.memory_space<vmem>>, vector<1x1x64xf32>
    %34 = vector.shape_cast %33 : vector<1x1x64xf32> to vector<1x64xf32>
    %35 = arith.mulf %11, %11 : vector<32x64xf32>
    %cst_17 = arith.constant dense<0.000000e+00> : vector<32xf32>
    %36 = vector.multi_reduction <add>, %35, %cst_17 [1] : vector<32x64xf32> to vector<32xf32>
    %37 = vector.shape_cast %36 : vector<32xf32> to vector<32x1xf32>
    %cst_18 = arith.constant 6.400000e+01 : f32
    %38 = vector.broadcast %cst_18 : f32 to vector<32x1xf32>
    %39 = arith.divf %37, %38 : vector<32x1xf32>
    %cst_19 = arith.constant 9.99999997E-7 : f32
    %40 = vector.broadcast %cst_19 : f32 to vector<32x1xf32>
    %41 = arith.addf %39, %40 : vector<32x1xf32>
    %42 = math.rsqrt %41 : vector<32x1xf32>
    %43 = vector.broadcast %42 : vector<32x1xf32> to vector<32x64xf32>
    %44 = arith.mulf %11, %43 : vector<32x64xf32>
    %45 = vector.broadcast %34 : vector<1x64xf32> to vector<32x64xf32>
    %46 = arith.mulf %44, %45 : vector<32x64xf32>
    %47 = arith.truncf %46 : vector<32x64xf32> to vector<32x64xbf16>
    %c0_20 = arith.constant 0 : index
    %c0_21 = arith.constant 0 : index
    %c0_22 = arith.constant 0 : index
    %48 = vector.load %arg6[%c0_20, %c0_21, %c0_22] : memref<2x64x192xbf16, #tpu.memory_space<vmem>>, vector<1x64x192xbf16>
    %49 = vector.shape_cast %48 : vector<1x64x192xbf16> to vector<64x192xbf16>
    %cst_23 = arith.constant dense<0.000000e+00> : vector<32x192xf32>
    %50 = tpu.matmul %47, %49, %cst_23 {dimension_numbers = #tpu.dot_dimension_numbers<[1], [0], [0], [1], [0, 0, 1, 1], [], []>} : vector<32x64xbf16>, vector<64x192xbf16>, vector<32x192xf32> -> vector<32x192xf32>
    %c0_24 = arith.constant 0 : index
    %c0_25 = arith.constant 0 : index
    %c0_26 = arith.constant 0 : index
    %51 = vector.load %arg7[%c0_24, %c0_25, %c0_26] : memref<2x1x192xf32, #tpu.memory_space<vmem>>, vector<1x1x192xf32>
    %52 = vector.shape_cast %51 : vector<1x1x192xf32> to vector<1x192xf32>
    %53 = vector.broadcast %52 : vector<1x192xf32> to vector<32x192xf32>
    %54 = arith.addf %50, %53 : vector<32x192xf32>
    %55 = arith.truncf %54 : vector<32x192xf32> to vector<32x192xbf16>
    %56 = vector.extract_strided_slice %55 {offsets = [0, 0], sizes = [32, 64], strides = [1, 1]} : vector<32x192xbf16> to vector<32x64xbf16>
    %57 = vector.extract_strided_slice %55 {offsets = [0, 64], sizes = [32, 64], strides = [1, 1]} : vector<32x192xbf16> to vector<32x64xbf16>
    %58 = vector.extract_strided_slice %55 {offsets = [0, 128], sizes = [32, 64], strides = [1, 1]} : vector<32x192xbf16> to vector<32x64xbf16>
    %59 = vector.extract_strided_slice %56 {offsets = [0, 0], sizes = [32, 32], strides = [1, 1]} : vector<32x64xbf16> to vector<32x32xbf16>
    %60 = vector.extract_strided_slice %57 {offsets = [0, 0], sizes = [32, 32], strides = [1, 1]} : vector<32x64xbf16> to vector<32x32xbf16>
    %61 = vector.extract_strided_slice %58 {offsets = [0, 0], sizes = [32, 32], strides = [1, 1]} : vector<32x64xbf16> to vector<32x32xbf16>
    %cst_27 = arith.constant dense<0.000000e+00> : vector<32x32xf32>
    %62 = tpu.matmul %59, %60, %cst_27 {dimension_numbers = #tpu.dot_dimension_numbers<[1], [1], [0], [0], [0, 0, 1, 0], [], []>} : vector<32x32xbf16>, vector<32x32xbf16>, vector<32x32xf32> -> vector<32x32xf32>
    %cst_28 = arith.constant 0.176776692 : f32
    %63 = vector.broadcast %cst_28 : f32 to vector<32x32xf32>
    %64 = arith.mulf %62, %63 : vector<32x32xf32>
    %65 = arith.addf %64, %32 : vector<32x32xf32>
    %cst_29 = arith.constant dense<0xFF800000> : vector<32xf32>
    %66 = vector.multi_reduction <maximumf>, %65, %cst_29 [1] : vector<32x32xf32> to vector<32xf32>
    %67 = vector.shape_cast %66 : vector<32xf32> to vector<32x1xf32>
    %68 = vector.broadcast %67 : vector<32x1xf32> to vector<32x32xf32>
    %69 = arith.subf %65, %68 : vector<32x32xf32>
    %70 = math.exp %69 : vector<32x32xf32>
    %cst_30 = arith.constant dense<0.000000e+00> : vector<32xf32>
    %71 = vector.multi_reduction <add>, %70, %cst_30 [1] : vector<32x32xf32> to vector<32xf32>
    %72 = vector.shape_cast %71 : vector<32xf32> to vector<32x1xf32>
    %73 = tpu.reciprocal %72 : vector<32x1xf32> -> vector<32x1xf32>
    %74 = vector.broadcast %73 : vector<32x1xf32> to vector<32x32xf32>
    %75 = arith.mulf %70, %74 : vector<32x32xf32>
    %76 = arith.truncf %75 : vector<32x32xf32> to vector<32x32xbf16>
    %cst_31 = arith.constant dense<0.000000e+00> : vector<32x32xf32>
    %77 = tpu.matmul %76, %61, %cst_31 {dimension_numbers = #tpu.dot_dimension_numbers<[1], [0], [0], [1], [0, 0, 1, 1], [], []>} : vector<32x32xbf16>, vector<32x32xbf16>, vector<32x32xf32> -> vector<32x32xf32>
    %78 = vector.extract_strided_slice %56 {offsets = [0, 32], sizes = [32, 32], strides = [1, 1]} : vector<32x64xbf16> to vector<32x32xbf16>
    %79 = vector.extract_strided_slice %57 {offsets = [0, 32], sizes = [32, 32], strides = [1, 1]} : vector<32x64xbf16> to vector<32x32xbf16>
    %80 = vector.extract_strided_slice %58 {offsets = [0, 32], sizes = [32, 32], strides = [1, 1]} : vector<32x64xbf16> to vector<32x32xbf16>
    %cst_32 = arith.constant dense<0.000000e+00> : vector<32x32xf32>
    %81 = tpu.matmul %78, %79, %cst_32 {dimension_numbers = #tpu.dot_dimension_numbers<[1], [1], [0], [0], [0, 0, 1, 0], [], []>} : vector<32x32xbf16>, vector<32x32xbf16>, vector<32x32xf32> -> vector<32x32xf32>
    %cst_33 = arith.constant 0.176776692 : f32
    %82 = vector.broadcast %cst_33 : f32 to vector<32x32xf32>
    %83 = arith.mulf %81, %82 : vector<32x32xf32>
    %84 = arith.addf %83, %32 : vector<32x32xf32>
    %cst_34 = arith.constant dense<0xFF800000> : vector<32xf32>
    %85 = vector.multi_reduction <maximumf>, %84, %cst_34 [1] : vector<32x32xf32> to vector<32xf32>
    %86 = vector.shape_cast %85 : vector<32xf32> to vector<32x1xf32>
    %87 = vector.broadcast %86 : vector<32x1xf32> to vector<32x32xf32>
    %88 = arith.subf %84, %87 : vector<32x32xf32>
    %89 = math.exp %88 : vector<32x32xf32>
    %cst_35 = arith.constant dense<0.000000e+00> : vector<32xf32>
    %90 = vector.multi_reduction <add>, %89, %cst_35 [1] : vector<32x32xf32> to vector<32xf32>
    %91 = vector.shape_cast %90 : vector<32xf32> to vector<32x1xf32>
    %92 = tpu.reciprocal %91 : vector<32x1xf32> -> vector<32x1xf32>
    %93 = vector.broadcast %92 : vector<32x1xf32> to vector<32x32xf32>
    %94 = arith.mulf %89, %93 : vector<32x32xf32>
    %95 = arith.truncf %94 : vector<32x32xf32> to vector<32x32xbf16>
    %cst_36 = arith.constant dense<0.000000e+00> : vector<32x32xf32>
    %96 = tpu.matmul %95, %80, %cst_36 {dimension_numbers = #tpu.dot_dimension_numbers<[1], [0], [0], [1], [0, 0, 1, 1], [], []>} : vector<32x32xbf16>, vector<32x32xbf16>, vector<32x32xf32> -> vector<32x32xf32>
    %97 = tpu.concatenate %77, %96 in 1 : vector<32x32xf32>, vector<32x32xf32> -> vector<32x64xf32>
    %98 = arith.truncf %97 : vector<32x64xf32> to vector<32x64xbf16>
    %c0_37 = arith.constant 0 : index
    %c0_38 = arith.constant 0 : index
    %c0_39 = arith.constant 0 : index
    %99 = vector.load %arg8[%c0_37, %c0_38, %c0_39] : memref<2x64x64xbf16, #tpu.memory_space<vmem>>, vector<1x64x64xbf16>
    %100 = vector.shape_cast %99 : vector<1x64x64xbf16> to vector<64x64xbf16>
    %cst_40 = arith.constant dense<0.000000e+00> : vector<32x64xf32>
    %101 = tpu.matmul %98, %100, %cst_40 {dimension_numbers = #tpu.dot_dimension_numbers<[1], [0], [0], [1], [0, 0, 1, 1], [], []>} : vector<32x64xbf16>, vector<64x64xbf16>, vector<32x64xf32> -> vector<32x64xf32>
    %102 = arith.addf %11, %101 : vector<32x64xf32>
    %c0_41 = arith.constant 0 : index
    %c0_42 = arith.constant 0 : index
    %c0_43 = arith.constant 0 : index
    %103 = vector.load %arg9[%c0_41, %c0_42, %c0_43] : memref<2x1x64xf32, #tpu.memory_space<vmem>>, vector<1x1x64xf32>
    %104 = vector.shape_cast %103 : vector<1x1x64xf32> to vector<1x64xf32>
    %105 = arith.mulf %102, %102 : vector<32x64xf32>
    %cst_44 = arith.constant dense<0.000000e+00> : vector<32xf32>
    %106 = vector.multi_reduction <add>, %105, %cst_44 [1] : vector<32x64xf32> to vector<32xf32>
    %107 = vector.shape_cast %106 : vector<32xf32> to vector<32x1xf32>
    %cst_45 = arith.constant 6.400000e+01 : f32
    %108 = vector.broadcast %cst_45 : f32 to vector<32x1xf32>
    %109 = arith.divf %107, %108 : vector<32x1xf32>
    %cst_46 = arith.constant 9.99999997E-7 : f32
    %110 = vector.broadcast %cst_46 : f32 to vector<32x1xf32>
    %111 = arith.addf %109, %110 : vector<32x1xf32>
    %112 = math.rsqrt %111 : vector<32x1xf32>
    %113 = vector.broadcast %112 : vector<32x1xf32> to vector<32x64xf32>
    %114 = arith.mulf %102, %113 : vector<32x64xf32>
    %115 = vector.broadcast %104 : vector<1x64xf32> to vector<32x64xf32>
    %116 = arith.mulf %114, %115 : vector<32x64xf32>
    %117 = arith.truncf %116 : vector<32x64xf32> to vector<32x64xbf16>
    %c0_47 = arith.constant 0 : index
    %c0_48 = arith.constant 0 : index
    %c0_49 = arith.constant 0 : index
    %118 = vector.load %arg10[%c0_47, %c0_48, %c0_49] : memref<2x64x256xbf16, #tpu.memory_space<vmem>>, vector<1x64x256xbf16>
    %119 = vector.shape_cast %118 : vector<1x64x256xbf16> to vector<64x256xbf16>
    %cst_50 = arith.constant dense<0.000000e+00> : vector<32x256xf32>
    %120 = tpu.matmul %117, %119, %cst_50 {dimension_numbers = #tpu.dot_dimension_numbers<[1], [0], [0], [1], [0, 0, 1, 1], [], []>} : vector<32x64xbf16>, vector<64x256xbf16>, vector<32x256xf32> -> vector<32x256xf32>
    %121 = vector.extract_strided_slice %120 {offsets = [0, 0], sizes = [32, 128], strides = [1, 1]} : vector<32x256xf32> to vector<32x128xf32>
    %122 = vector.extract_strided_slice %120 {offsets = [0, 128], sizes = [32, 128], strides = [1, 1]} : vector<32x256xf32> to vector<32x128xf32>
    %123 = arith.negf %121 : vector<32x128xf32>
    %124 = math.exp %123 : vector<32x128xf32>
    %cst_51 = arith.constant 1.000000e+00 : f32
    %125 = vector.broadcast %cst_51 : f32 to vector<32x128xf32>
    %126 = arith.addf %125, %124 : vector<32x128xf32>
    %127 = arith.divf %125, %126 : vector<32x128xf32>
    %128 = arith.mulf %121, %127 : vector<32x128xf32>
    %129 = arith.mulf %128, %122 : vector<32x128xf32>
    %130 = arith.truncf %129 : vector<32x128xf32> to vector<32x128xbf16>
    %c0_52 = arith.constant 0 : index
    %c0_53 = arith.constant 0 : index
    %c0_54 = arith.constant 0 : index
    %131 = vector.load %arg11[%c0_52, %c0_53, %c0_54] : memref<2x128x64xbf16, #tpu.memory_space<vmem>>, vector<1x128x64xbf16>
    %132 = vector.shape_cast %131 : vector<1x128x64xbf16> to vector<128x64xbf16>
    %cst_55 = arith.constant dense<0.000000e+00> : vector<32x64xf32>
    %133 = tpu.matmul %130, %132, %cst_55 {dimension_numbers = #tpu.dot_dimension_numbers<[1], [0], [0], [1], [0, 0, 1, 1], [], []>} : vector<32x128xbf16>, vector<128x64xbf16>, vector<32x64xf32> -> vector<32x64xf32>
    %134 = arith.addf %102, %133 : vector<32x64xf32>
    %c1 = arith.constant 1 : index
    %c0_56 = arith.constant 0 : index
    %c0_57 = arith.constant 0 : index
    %135 = vector.load %arg5[%c1, %c0_56, %c0_57] : memref<2x1x64xf32, #tpu.memory_space<vmem>>, vector<1x1x64xf32>
    %136 = vector.shape_cast %135 : vector<1x1x64xf32> to vector<1x64xf32>
    %137 = arith.mulf %134, %134 : vector<32x64xf32>
    %cst_58 = arith.constant dense<0.000000e+00> : vector<32xf32>
    %138 = vector.multi_reduction <add>, %137, %cst_58 [1] : vector<32x64xf32> to vector<32xf32>
    %139 = vector.shape_cast %138 : vector<32xf32> to vector<32x1xf32>
    %cst_59 = arith.constant 6.400000e+01 : f32
    %140 = vector.broadcast %cst_59 : f32 to vector<32x1xf32>
    %141 = arith.divf %139, %140 : vector<32x1xf32>
    %cst_60 = arith.constant 9.99999997E-7 : f32
    %142 = vector.broadcast %cst_60 : f32 to vector<32x1xf32>
    %143 = arith.addf %141, %142 : vector<32x1xf32>
    %144 = math.rsqrt %143 : vector<32x1xf32>
    %145 = vector.broadcast %144 : vector<32x1xf32> to vector<32x64xf32>
    %146 = arith.mulf %134, %145 : vector<32x64xf32>
    %147 = vector.broadcast %136 : vector<1x64xf32> to vector<32x64xf32>
    %148 = arith.mulf %146, %147 : vector<32x64xf32>
    %149 = arith.truncf %148 : vector<32x64xf32> to vector<32x64xbf16>
    %c1_61 = arith.constant 1 : index
    %c0_62 = arith.constant 0 : index
    %c0_63 = arith.constant 0 : index
    %150 = vector.load %arg6[%c1_61, %c0_62, %c0_63] : memref<2x64x192xbf16, #tpu.memory_space<vmem>>, vector<1x64x192xbf16>
    %151 = vector.shape_cast %150 : vector<1x64x192xbf16> to vector<64x192xbf16>
    %cst_64 = arith.constant dense<0.000000e+00> : vector<32x192xf32>
    %152 = tpu.matmul %149, %151, %cst_64 {dimension_numbers = #tpu.dot_dimension_numbers<[1], [0], [0], [1], [0, 0, 1, 1], [], []>} : vector<32x64xbf16>, vector<64x192xbf16>, vector<32x192xf32> -> vector<32x192xf32>
    %c1_65 = arith.constant 1 : index
    %c0_66 = arith.constant 0 : index
    %c0_67 = arith.constant 0 : index
    %153 = vector.load %arg7[%c1_65, %c0_66, %c0_67] : memref<2x1x192xf32, #tpu.memory_space<vmem>>, vector<1x1x192xf32>
    %154 = vector.shape_cast %153 : vector<1x1x192xf32> to vector<1x192xf32>
    %155 = vector.broadcast %154 : vector<1x192xf32> to vector<32x192xf32>
    %156 = arith.addf %152, %155 : vector<32x192xf32>
    %157 = arith.truncf %156 : vector<32x192xf32> to vector<32x192xbf16>
    %158 = vector.extract_strided_slice %157 {offsets = [0, 0], sizes = [32, 64], strides = [1, 1]} : vector<32x192xbf16> to vector<32x64xbf16>
    %159 = vector.extract_strided_slice %157 {offsets = [0, 64], sizes = [32, 64], strides = [1, 1]} : vector<32x192xbf16> to vector<32x64xbf16>
    %160 = vector.extract_strided_slice %157 {offsets = [0, 128], sizes = [32, 64], strides = [1, 1]} : vector<32x192xbf16> to vector<32x64xbf16>
    %161 = vector.extract_strided_slice %158 {offsets = [0, 0], sizes = [32, 32], strides = [1, 1]} : vector<32x64xbf16> to vector<32x32xbf16>
    %162 = vector.extract_strided_slice %159 {offsets = [0, 0], sizes = [32, 32], strides = [1, 1]} : vector<32x64xbf16> to vector<32x32xbf16>
    %163 = vector.extract_strided_slice %160 {offsets = [0, 0], sizes = [32, 32], strides = [1, 1]} : vector<32x64xbf16> to vector<32x32xbf16>
    %cst_68 = arith.constant dense<0.000000e+00> : vector<32x32xf32>
    %164 = tpu.matmul %161, %162, %cst_68 {dimension_numbers = #tpu.dot_dimension_numbers<[1], [1], [0], [0], [0, 0, 1, 0], [], []>} : vector<32x32xbf16>, vector<32x32xbf16>, vector<32x32xf32> -> vector<32x32xf32>
    %cst_69 = arith.constant 0.176776692 : f32
    %165 = vector.broadcast %cst_69 : f32 to vector<32x32xf32>
    %166 = arith.mulf %164, %165 : vector<32x32xf32>
    %167 = arith.addf %166, %32 : vector<32x32xf32>
    %cst_70 = arith.constant dense<0xFF800000> : vector<32xf32>
    %168 = vector.multi_reduction <maximumf>, %167, %cst_70 [1] : vector<32x32xf32> to vector<32xf32>
    %169 = vector.shape_cast %168 : vector<32xf32> to vector<32x1xf32>
    %170 = vector.broadcast %169 : vector<32x1xf32> to vector<32x32xf32>
    %171 = arith.subf %167, %170 : vector<32x32xf32>
    %172 = math.exp %171 : vector<32x32xf32>
    %cst_71 = arith.constant dense<0.000000e+00> : vector<32xf32>
    %173 = vector.multi_reduction <add>, %172, %cst_71 [1] : vector<32x32xf32> to vector<32xf32>
    %174 = vector.shape_cast %173 : vector<32xf32> to vector<32x1xf32>
    %175 = tpu.reciprocal %174 : vector<32x1xf32> -> vector<32x1xf32>
    %176 = vector.broadcast %175 : vector<32x1xf32> to vector<32x32xf32>
    %177 = arith.mulf %172, %176 : vector<32x32xf32>
    %178 = arith.truncf %177 : vector<32x32xf32> to vector<32x32xbf16>
    %cst_72 = arith.constant dense<0.000000e+00> : vector<32x32xf32>
    %179 = tpu.matmul %178, %163, %cst_72 {dimension_numbers = #tpu.dot_dimension_numbers<[1], [0], [0], [1], [0, 0, 1, 1], [], []>} : vector<32x32xbf16>, vector<32x32xbf16>, vector<32x32xf32> -> vector<32x32xf32>
    %180 = vector.extract_strided_slice %158 {offsets = [0, 32], sizes = [32, 32], strides = [1, 1]} : vector<32x64xbf16> to vector<32x32xbf16>
    %181 = vector.extract_strided_slice %159 {offsets = [0, 32], sizes = [32, 32], strides = [1, 1]} : vector<32x64xbf16> to vector<32x32xbf16>
    %182 = vector.extract_strided_slice %160 {offsets = [0, 32], sizes = [32, 32], strides = [1, 1]} : vector<32x64xbf16> to vector<32x32xbf16>
    %cst_73 = arith.constant dense<0.000000e+00> : vector<32x32xf32>
    %183 = tpu.matmul %180, %181, %cst_73 {dimension_numbers = #tpu.dot_dimension_numbers<[1], [1], [0], [0], [0, 0, 1, 0], [], []>} : vector<32x32xbf16>, vector<32x32xbf16>, vector<32x32xf32> -> vector<32x32xf32>
    %cst_74 = arith.constant 0.176776692 : f32
    %184 = vector.broadcast %cst_74 : f32 to vector<32x32xf32>
    %185 = arith.mulf %183, %184 : vector<32x32xf32>
    %186 = arith.addf %185, %32 : vector<32x32xf32>
    %cst_75 = arith.constant dense<0xFF800000> : vector<32xf32>
    %187 = vector.multi_reduction <maximumf>, %186, %cst_75 [1] : vector<32x32xf32> to vector<32xf32>
    %188 = vector.shape_cast %187 : vector<32xf32> to vector<32x1xf32>
    %189 = vector.broadcast %188 : vector<32x1xf32> to vector<32x32xf32>
    %190 = arith.subf %186, %189 : vector<32x32xf32>
    %191 = math.exp %190 : vector<32x32xf32>
    %cst_76 = arith.constant dense<0.000000e+00> : vector<32xf32>
    %192 = vector.multi_reduction <add>, %191, %cst_76 [1] : vector<32x32xf32> to vector<32xf32>
    %193 = vector.shape_cast %192 : vector<32xf32> to vector<32x1xf32>
    %194 = tpu.reciprocal %193 : vector<32x1xf32> -> vector<32x1xf32>
    %195 = vector.broadcast %194 : vector<32x1xf32> to vector<32x32xf32>
    %196 = arith.mulf %191, %195 : vector<32x32xf32>
    %197 = arith.truncf %196 : vector<32x32xf32> to vector<32x32xbf16>
    %cst_77 = arith.constant dense<0.000000e+00> : vector<32x32xf32>
    %198 = tpu.matmul %197, %182, %cst_77 {dimension_numbers = #tpu.dot_dimension_numbers<[1], [0], [0], [1], [0, 0, 1, 1], [], []>} : vector<32x32xbf16>, vector<32x32xbf16>, vector<32x32xf32> -> vector<32x32xf32>
    %199 = tpu.concatenate %179, %198 in 1 : vector<32x32xf32>, vector<32x32xf32> -> vector<32x64xf32>
    %200 = arith.truncf %199 : vector<32x64xf32> to vector<32x64xbf16>
    %c1_78 = arith.constant 1 : index
    %c0_79 = arith.constant 0 : index
    %c0_80 = arith.constant 0 : index
    %201 = vector.load %arg8[%c1_78, %c0_79, %c0_80] : memref<2x64x64xbf16, #tpu.memory_space<vmem>>, vector<1x64x64xbf16>
    %202 = vector.shape_cast %201 : vector<1x64x64xbf16> to vector<64x64xbf16>
    %cst_81 = arith.constant dense<0.000000e+00> : vector<32x64xf32>
    %203 = tpu.matmul %200, %202, %cst_81 {dimension_numbers = #tpu.dot_dimension_numbers<[1], [0], [0], [1], [0, 0, 1, 1], [], []>} : vector<32x64xbf16>, vector<64x64xbf16>, vector<32x64xf32> -> vector<32x64xf32>
    %204 = arith.addf %134, %203 : vector<32x64xf32>
    %c1_82 = arith.constant 1 : index
    %c0_83 = arith.constant 0 : index
    %c0_84 = arith.constant 0 : index
    %205 = vector.load %arg9[%c1_82, %c0_83, %c0_84] : memref<2x1x64xf32, #tpu.memory_space<vmem>>, vector<1x1x64xf32>
    %206 = vector.shape_cast %205 : vector<1x1x64xf32> to vector<1x64xf32>
    %207 = arith.mulf %204, %204 : vector<32x64xf32>
    %cst_85 = arith.constant dense<0.000000e+00> : vector<32xf32>
    %208 = vector.multi_reduction <add>, %207, %cst_85 [1] : vector<32x64xf32> to vector<32xf32>
    %209 = vector.shape_cast %208 : vector<32xf32> to vector<32x1xf32>
    %cst_86 = arith.constant 6.400000e+01 : f32
    %210 = vector.broadcast %cst_86 : f32 to vector<32x1xf32>
    %211 = arith.divf %209, %210 : vector<32x1xf32>
    %cst_87 = arith.constant 9.99999997E-7 : f32
    %212 = vector.broadcast %cst_87 : f32 to vector<32x1xf32>
    %213 = arith.addf %211, %212 : vector<32x1xf32>
    %214 = math.rsqrt %213 : vector<32x1xf32>
    %215 = vector.broadcast %214 : vector<32x1xf32> to vector<32x64xf32>
    %216 = arith.mulf %204, %215 : vector<32x64xf32>
    %217 = vector.broadcast %206 : vector<1x64xf32> to vector<32x64xf32>
    %218 = arith.mulf %216, %217 : vector<32x64xf32>
    %219 = arith.truncf %218 : vector<32x64xf32> to vector<32x64xbf16>
    %c1_88 = arith.constant 1 : index
    %c0_89 = arith.constant 0 : index
    %c0_90 = arith.constant 0 : index
    %220 = vector.load %arg10[%c1_88, %c0_89, %c0_90] : memref<2x64x256xbf16, #tpu.memory_space<vmem>>, vector<1x64x256xbf16>
    %221 = vector.shape_cast %220 : vector<1x64x256xbf16> to vector<64x256xbf16>
    %cst_91 = arith.constant dense<0.000000e+00> : vector<32x256xf32>
    %222 = tpu.matmul %219, %221, %cst_91 {dimension_numbers = #tpu.dot_dimension_numbers<[1], [0], [0], [1], [0, 0, 1, 1], [], []>} : vector<32x64xbf16>, vector<64x256xbf16>, vector<32x256xf32> -> vector<32x256xf32>
    %223 = vector.extract_strided_slice %222 {offsets = [0, 0], sizes = [32, 128], strides = [1, 1]} : vector<32x256xf32> to vector<32x128xf32>
    %224 = vector.extract_strided_slice %222 {offsets = [0, 128], sizes = [32, 128], strides = [1, 1]} : vector<32x256xf32> to vector<32x128xf32>
    %225 = arith.negf %223 : vector<32x128xf32>
    %226 = math.exp %225 : vector<32x128xf32>
    %cst_92 = arith.constant 1.000000e+00 : f32
    %227 = vector.broadcast %cst_92 : f32 to vector<32x128xf32>
    %228 = arith.addf %227, %226 : vector<32x128xf32>
    %229 = arith.divf %227, %228 : vector<32x128xf32>
    %230 = arith.mulf %223, %229 : vector<32x128xf32>
    %231 = arith.mulf %230, %224 : vector<32x128xf32>
    %232 = arith.truncf %231 : vector<32x128xf32> to vector<32x128xbf16>
    %c1_93 = arith.constant 1 : index
    %c0_94 = arith.constant 0 : index
    %c0_95 = arith.constant 0 : index
    %233 = vector.load %arg11[%c1_93, %c0_94, %c0_95] : memref<2x128x64xbf16, #tpu.memory_space<vmem>>, vector<1x128x64xbf16>
    %234 = vector.shape_cast %233 : vector<1x128x64xbf16> to vector<128x64xbf16>
    %cst_96 = arith.constant dense<0.000000e+00> : vector<32x64xf32>
    %235 = tpu.matmul %232, %234, %cst_96 {dimension_numbers = #tpu.dot_dimension_numbers<[1], [0], [0], [1], [0, 0, 1, 1], [], []>} : vector<32x128xbf16>, vector<128x64xbf16>, vector<32x64xf32> -> vector<32x64xf32>
    %236 = arith.addf %204, %235 : vector<32x64xf32>
    %237 = vector.extract_strided_slice %236 {offsets = [8, 0], sizes = [8, 64], strides = [1, 1]} : vector<32x64xf32> to vector<8x64xf32>
    %238 = vector.extract_strided_slice %236 {offsets = [24, 0], sizes = [8, 64], strides = [1, 1]} : vector<32x64xf32> to vector<8x64xf32>
    %239 = tpu.concatenate %237, %238 in 0 : vector<8x64xf32>, vector<8x64xf32> -> vector<16x64xf32>
    %c0_97 = arith.constant 0 : index
    %c0_98 = arith.constant 0 : index
    %240 = vector.load %arg12[%c0_97, %c0_98] : memref<1x64xf32, #tpu.memory_space<vmem>>, vector<1x64xf32>
    %241 = arith.mulf %239, %239 : vector<16x64xf32>
    %cst_99 = arith.constant dense<0.000000e+00> : vector<16xf32>
    %242 = vector.multi_reduction <add>, %241, %cst_99 [1] : vector<16x64xf32> to vector<16xf32>
    %243 = vector.shape_cast %242 : vector<16xf32> to vector<16x1xf32>
    %cst_100 = arith.constant 6.400000e+01 : f32
    %244 = vector.broadcast %cst_100 : f32 to vector<16x1xf32>
    %245 = arith.divf %243, %244 : vector<16x1xf32>
    %cst_101 = arith.constant 9.99999997E-7 : f32
    %246 = vector.broadcast %cst_101 : f32 to vector<16x1xf32>
    %247 = arith.addf %245, %246 : vector<16x1xf32>
    %248 = math.rsqrt %247 : vector<16x1xf32>
    %249 = vector.broadcast %248 : vector<16x1xf32> to vector<16x64xf32>
    %250 = arith.mulf %239, %249 : vector<16x64xf32>
    %251 = vector.broadcast %240 : vector<1x64xf32> to vector<16x64xf32>
    %252 = arith.mulf %250, %251 : vector<16x64xf32>
    %253 = arith.truncf %252 : vector<16x64xf32> to vector<16x64xbf16>
    %c0_102 = arith.constant 0 : index
    %c0_103 = arith.constant 0 : index
    %254 = vector.load %arg13[%c0_102, %c0_103] : memref<64x128xbf16, #tpu.memory_space<vmem>>, vector<64x128xbf16>
    %cst_104 = arith.constant dense<0.000000e+00> : vector<16x128xf32>
    %255 = tpu.matmul %253, %254, %cst_104 {dimension_numbers = #tpu.dot_dimension_numbers<[1], [0], [0], [1], [0, 0, 1, 1], [], []>} : vector<16x64xbf16>, vector<64x128xbf16>, vector<16x128xf32> -> vector<16x128xf32>
    %c0_105 = arith.constant 0 : index
    %c0_106 = arith.constant 0 : index
    %256 = vector.load %arg14[%c0_105, %c0_106] : memref<16x128xf32, #tpu.memory_space<vmem>>, vector<16x128xf32>
    tpu.vector_store %arg14[%c0_105, %c0_106], %255 {strides = array<i32>} : memref<16x128xf32, #tpu.memory_space<vmem>>, vector<16x128xf32>,
    return
  }
}

</mosaic_0001>

<llo_original>
// kernel: qwen_with_image_prefix.1
$region0: #{qwen_with_image_prefix.1}
  #allocation0 [shape = 'u32[]', space=smem, size = 0x4, offset = 0x4, fixed_abs, tag = 'smem constant byte address 0x4 - core index']
  #allocation1 [shape = 'u32[144,128]{1,0:T(1,128)}', space=vmem, size = 0x12000, scoped, tag = 'internal scratch']
  %s0 = inlined_call_operand.vmem [shape: bf16[16,48], index: 0, kind: input, shape index: {}]
  %s1 = inlined_call_operand.vmem [shape: f32[16,64], index: 1, kind: input, shape index: {}]
  %s2 = inlined_call_operand.vmem [shape: f32[1,32], index: 2, kind: input, shape index: {}]
  %s3 = inlined_call_operand.vmem [shape: bf16[48,64], index: 3, kind: input, shape index: {}]
  %s4 = inlined_call_operand.vmem [shape: f32[1,64], index: 4, kind: input, shape index: {}]
  %s5 = inlined_call_operand.vmem [shape: f32[2,1,64], index: 5, kind: input, shape index: {}]
  %s6 = inlined_call_operand.vmem [shape: bf16[2,64,192], index: 6, kind: input, shape index: {}]
  %s7 = inlined_call_operand.vmem [shape: f32[2,1,192], index: 7, kind: input, shape index: {}]
  %s8 = inlined_call_operand.vmem [shape: bf16[2,64,64], index: 8, kind: input, shape index: {}]
  %s9 = inlined_call_operand.vmem [shape: f32[2,1,64], index: 9, kind: input, shape index: {}]
  %s10 = inlined_call_operand.vmem [shape: bf16[2,64,256], index: 10, kind: input, shape index: {}]
  %s11 = inlined_call_operand.vmem [shape: bf16[2,128,64], index: 11, kind: input, shape index: {}]
  %s12 = inlined_call_operand.vmem [shape: f32[1,64], index: 12, kind: input, shape index: {}]
  %s13 = inlined_call_operand.vmem [shape: bf16[64,128], index: 13, kind: input, shape index: {}]
  %s14 = inlined_call_operand.hbm [shape: f32[16,128], index: 14, kind: output, shape index: {}]
  %s15 = sld [smem:[#allocation0]]
  $region66: #{qwen_with_image_prefix.1} parent=0
    _
  %s17 = ssub.s32 1, %s15
  %s18 = scalar_select 0, %s17, %s15
  $region1: #{qwen_with_image_prefix.1} parent=0
    #allocation2 [shape = 'u8[8192]{0}', space=vmem, size = 0x2000, scoped, tag = 'output window, operand 0, single buffered']
    #allocation3 [shape = 's32[1]{0}', space=sflag, size = 0x4, scoped, tag = 'scoped memory for qwen_with_image_prefix.1']
    %19 = vsyncpa [#allocation3], 0
    // Predicated region
    $region2: #{qwen_with_image_prefix.1} parent=1 // pred_check
      _
    $region3: #{qwen_with_image_prefix.1} parent=1 // pred_check_branch
      %21 = sbr.rel (0) target = $region5
    $region4: #{qwen_with_image_prefix.1} parent=1 // pred_region
      _
    $region5: #{qwen_with_image_prefix.1} parent=1 // pred_fallthru
      _
    // Predicated region
    $region6: #{qwen_with_image_prefix.1} parent=1 // pred_check
      _
    $region7: #{qwen_with_image_prefix.1} parent=1 // pred_check_branch
      %23 = sbr.rel (0) target = $region9
    $region8: #{qwen_with_image_prefix.1} parent=1 // pred_region
      _
    $region9: #{qwen_with_image_prefix.1} parent=1 // pred_fallthru
      _
    // Predicated region
    $region10: #{qwen_with_image_prefix.1} parent=1 // pred_check
      _
    $region11: #{qwen_with_image_prefix.1} parent=1 // pred_check_branch
      %25 = sbr.rel (0) target = $region13
    $region12: #{qwen_with_image_prefix.1} parent=1 // pred_region
      _
    $region13: #{qwen_with_image_prefix.1} parent=1 // pred_fallthru
      _
    // Predicated region
    $region14: #{qwen_with_image_prefix.1} parent=1 // pred_check
      _
    $region15: #{qwen_with_image_prefix.1} parent=1 // pred_check_branch
      %27 = sbr.rel (0) target = $region17
    $region16: #{qwen_with_image_prefix.1} parent=1 // pred_region
      _
    $region17: #{qwen_with_image_prefix.1} parent=1 // pred_fallthru
      _
    // Predicated region
    $region18: #{qwen_with_image_prefix.1} parent=1 // pred_check
      _
    $region19: #{qwen_with_image_prefix.1} parent=1 // pred_check_branch
      %29 = sbr.rel (0) target = $region21
    $region20: #{qwen_with_image_prefix.1} parent=1 // pred_region
      _
    $region21: #{qwen_with_image_prefix.1} parent=1 // pred_fallthru
      _
    // Predicated region
    $region22: #{qwen_with_image_prefix.1} parent=1 // pred_check
      _
    $region23: #{qwen_with_image_prefix.1} parent=1 // pred_check_branch
      %31 = sbr.rel (0) target = $region25
    $region24: #{qwen_with_image_prefix.1} parent=1 // pred_region
      _
    $region25: #{qwen_with_image_prefix.1} parent=1 // pred_fallthru
      _
    // Predicated region
    $region26: #{qwen_with_image_prefix.1} parent=1 // pred_check
      _
    $region27: #{qwen_with_image_prefix.1} parent=1 // pred_check_branch
      %33 = sbr.rel (0) target = $region29
    $region28: #{qwen_with_image_prefix.1} parent=1 // pred_region
      _
    $region29: #{qwen_with_image_prefix.1} parent=1 // pred_fallthru
      _
    // Predicated region
    $region30: #{qwen_with_image_prefix.1} parent=1 // pred_check
      _
    $region31: #{qwen_with_image_prefix.1} parent=1 // pred_check_branch
      %35 = sbr.rel (0) target = $region33
    $region32: #{qwen_with_image_prefix.1} parent=1 // pred_region
      _
    $region33: #{qwen_with_image_prefix.1} parent=1 // pred_fallthru
      _
    // Predicated region
    $region34: #{qwen_with_image_prefix.1} parent=1 // pred_check
      _
    $region35: #{qwen_with_image_prefix.1} parent=1 // pred_check_branch
      %37 = sbr.rel (0) target = $region37
    $region36: #{qwen_with_image_prefix.1} parent=1 // pred_region
      _
    $region37: #{qwen_with_image_prefix.1} parent=1 // pred_fallthru
      _
    // Predicated region
    $region38: #{qwen_with_image_prefix.1} parent=1 // pred_check
      _
    $region39: #{qwen_with_image_prefix.1} parent=1 // pred_check_branch
      %39 = sbr.rel (0) target = $region41
    $region40: #{qwen_with_image_prefix.1} parent=1 // pred_region
      _
    $region41: #{qwen_with_image_prefix.1} parent=1 // pred_fallthru
      _
    // Predicated region
    $region42: #{qwen_with_image_prefix.1} parent=1 // pred_check
      _
    $region43: #{qwen_with_image_prefix.1} parent=1 // pred_check_branch
      %41 = sbr.rel (0) target = $region45
    $region44: #{qwen_with_image_prefix.1} parent=1 // pred_region
      _
    $region45: #{qwen_with_image_prefix.1} parent=1 // pred_fallthru
      _
    // Predicated region
    $region46: #{qwen_with_image_prefix.1} parent=1 // pred_check
      _
    $region47: #{qwen_with_image_prefix.1} parent=1 // pred_check_branch
      %43 = sbr.rel (0) target = $region49
    $region48: #{qwen_with_image_prefix.1} parent=1 // pred_region
      _
    $region49: #{qwen_with_image_prefix.1} parent=1 // pred_fallthru
      _
    // Predicated region
    $region50: #{qwen_with_image_prefix.1} parent=1 // pred_check
      _
    $region51: #{qwen_with_image_prefix.1} parent=1 // pred_check_branch
      %45 = sbr.rel (0) target = $region53
    $region52: #{qwen_with_image_prefix.1} parent=1 // pred_region
      _
    $region53: #{qwen_with_image_prefix.1} parent=1 // pred_fallthru
      _
    // Predicated region
    $region54: #{qwen_with_image_prefix.1} parent=1 // pred_check
      _
    $region55: #{qwen_with_image_prefix.1} parent=1 // pred_check_branch
      %47 = sbr.rel (0) target = $region57
    $region56: #{qwen_with_image_prefix.1} parent=1 // pred_region
      _
    $region57: #{qwen_with_image_prefix.1} parent=1 // pred_fallthru
      _
    %v49 = vld [vmem:[%s0] sm:$0xf]
    %v50 = vld [vmem:[%s0 + $0x4] sm:$0xf]
    %v51 = vld [vmem:[%s3] sm:$0xf]
    %v52 = vld [vmem:[%s3 + $0x4] sm:$0xf]
    %v53 = vld [vmem:[%s3 + $0x8] sm:$0xf]
    %v54 = vld [vmem:[%s3 + $0xc] sm:$0xf]
    %v55 = vld [vmem:[%s3 + $0x10] sm:$0xf]
    %v56 = vld [vmem:[%s3 + $0x14] sm:$0xf]
    %v57 = vld [vmem:[%s4] sm:$0x1]
    %v59 = vlaneseq
    %v60 = vshrl.u32 %v59, 7
    %v61 = vsub.s32 0, %v60
    %v62 = vrot.slane %v57, %v61
    %v66 = vunpack.c.l.b16 %v49
    %v67 = vunpack.c.l.b16 %v50
    %v68 = vpack.c.b16 %v67, %v66
    %v75 = vunpack.c.l.b16 %v51
    %v76 = vunpack.c.l.b16 %v52
    %v77 = vunpack.c.l.b16 %v53
    %v78 = vunpack.c.l.b16 %v54
    %v79 = vunpack.c.l.b16 %v55
    %v80 = vunpack.c.l.b16 %v56
    %v81 = vpack.c.b16 %v76, %v75
    %v82 = vpack.c.b16 %v78, %v77
    %v83 = vpack.c.b16 %v80, %v79
    %vm87 = vcmask 392192
    %v89 = vsel %vm87, %v68, 0
    %91 = vmatprep.subr.bf16.mxu0 0
    %92 = vmatpush1.bf16.msra.mxu0 0
    %93 = vmatprep.subr.bf16.mxu0 0
    %94 = vmatpush1.bf16.msra.mxu0 0
    %95 = vmatprep.subr.bf16.mxu0 0
    %96 = vmatpush1.bf16.msra.mxu0 0
    %97 = vmatprep.subr.bf16.mxu0 0
    %98 = vmatpush1.bf16.msra.mxu0 0
    %99 = vmatprep.subr.bf16.mxu0 0
    %100 = vmatpush1.bf16.msra.mxu0 0
    %101 = vmatprep.subr.bf16.mxu0 0
    %102 = vmatpush1.bf16.msra.mxu0 %v83
    %103 = vmatprep.subr.bf16.mxu0 0
    %104 = vmatpush1.bf16.msra.mxu0 %v82
    %105 = vmatprep.subr.bf16.mxu0 0
    %106 = vmatpush1.bf16.msra.mxu0 %v81
    %107 = vmatprep.subr.bf16.mxu0 0
    %108 = vmatpush2.bf16.msra.mxu0 0
    %109 = vmatprep.subr.bf16.mxu0 0
    %110 = vmatpush2.bf16.msra.mxu0 0
    %111 = vmatprep.subr.bf16.mxu0 0
    %112 = vmatpush2.bf16.msra.mxu0 0
    %113 = vmatprep.subr.bf16.mxu0 0
    %114 = vmatpush2.bf16.msra.mxu0 0
    %115 = vmatprep.subr.bf16.mxu0 0
    %116 = vmatpush2.bf16.msra.mxu0 0
    %117 = vmatprep.subr.bf16.mxu0 0
    %118 = vmatpush2.bf16.msra.mxu0 0
    %119 = vmatprep.subr.bf16.mxu0 0
    %120 = vmatpush2.bf16.msra.mxu0 0
    %121 = vmatprep.subr.bf16.mxu0 0
    %122 = vmatpush2.bf16.msra.mxu0 0
    %123 = vmatprep.mubr.bf16.mxu0 0
    %124 = vmatmul.mubr.bf16.gmra.mxu0 %v89
    %v125 = vpop.f32.mrf.mxu0
    %v126 = vadd.f32 %v62, %v125
    %v127 = vpop.f32.mrf.mxu0
    %v128 = vpop.f32.mrf.mxu0
    %v129 = vadd.f32 %v62, %v128
    %v130 = vpop.f32.mrf.mxu0
    %131 = vdwg.mxu0
    %v132 = vld [vmem:[%s1] sm:$0xff]
    %v133 = vld [vmem:[%s1 + $0x8] sm:$0xff]
    %v134 = vlaneseq
    %v135 = vshrl.u32 %v134, 7
    %v136 = vadd.s32 %v135, 8
    %v137 = vadd.s32 %v135, 16
    %v138 = vadd.s32 %v135, 24
    %v139 = vlaneseq
    %v140 = vand.u32 %v139, 127
    %v141 = vshra.s32 %v135, 4
    %v142 = vshra.s32 %v136, 4
    %v143 = vshra.s32 %v137, 4
    %v144 = vshra.s32 %v138, 4
    %v145 = vshra.s32 %v140, 4
    %vm146 = vcmp.eq.s32.totalorder %v141, %v145
    %vm147 = vcmp.eq.s32.totalorder %v142, %v145
    %vm148 = vcmp.eq.s32.totalorder %v143, %v145
    %vm149 = vcmp.eq.s32.totalorder %v144, %v145
    %v150 = vand.u32 %v140, 15
    %v151 = vand.u32 %v135, 15
    %v152 = vand.u32 %v136, 15
    %v153 = vand.u32 %v137, 15
    %v154 = vand.u32 %v138, 15
    %vm155 = vcmp.le.s32.totalorder %v150, %v151
    %vm156 = vcmp.le.s32.totalorder %v150, %v152
    %vm157 = vcmp.le.s32.totalorder %v150, %v153
    %vm158 = vcmp.le.s32.totalorder %v150, %v154
    %vm159 = vmand %vm146, %vm155
    %vm160 = vmand %vm147, %vm156
    %vm161 = vmand %vm148, %vm157
    %vm162 = vmand %vm149, %vm158
    %v163 = vld [vmem:[%s2] sm:$0x1]
    %vm164 = vcmp.gt.f32.partialorder %v163, 0.0
    %v165 = vsel %vm164, 1, 0
    %v166 = vlaneseq
    %v167 = vshrl.u32 %v166, 7
    %v168 = vsub.s32 0, %v167
    %v169 = vrot.slane %v165, %v168
    %vm170 = vcmp.eq.s32.totalorder %v169, 1
    %vm171 = vmand %vm159, %vm170
    %vm172 = vmand %vm160, %vm170
    %vm173 = vmand %vm161, %vm170
    %vm174 = vmand %vm162, %vm170
    %v175 = vsel %vm171, 0.0, -1e+09
    %v176 = vsel %vm172, 0.0, -1e+09
    %v177 = vsel %vm173, 0.0, -1e+09
    %v178 = vsel %vm174, 0.0, -1e+09
    %v179 = vld [vmem:[%s5] sm:$0x1]
    %v180 = vmul.f32 %v126, %v126
    %v181 = vmul.f32 %v132, %v132
    %v182 = vmul.f32 %v129, %v129
    %v183 = vmul.f32 %v133, %v133
    %vm184 = vcmask 523264
    %v185 = vsel %vm184, %v180, 0.0
    %186 = vadd.xlane.f32.xlu0 %v185
    %v187 = vpop.xlane.xlu0 %186
    %v188 = vsel %vm184, %v181, 0.0
    %189 = vadd.xlane.f32.xlu0 %v188
    %v190 = vpop.xlane.xlu0 %189
    %v191 = vsel %vm184, %v182, 0.0
    %192 = vadd.xlane.f32.xlu0 %v191
    %v193 = vpop.xlane.xlu0 %192
    %v194 = vsel %vm184, %v183, 0.0
    %195 = vadd.xlane.f32.xlu0 %v194
    %v196 = vpop.xlane.xlu0 %195
    %v197 = vrcp.pop 64.0
    %v198 = vmul.f32 %v187, %v197
    %v199 = vmul.f32 %v190, %v197
    %v200 = vmul.f32 %v193, %v197
    %v201 = vmul.f32 %v196, %v197
    %v202 = vadd.f32 %v198, 1e-06
    %v203 = vadd.f32 %v199, 1e-06
    %v204 = vadd.f32 %v200, 1e-06
    %v205 = vadd.f32 %v201, 1e-06
    %v206 = vrsqrt.pop %v202
    %v207 = vrsqrt.pop %v203
    %v208 = vrsqrt.pop %v204
    %v209 = vrsqrt.pop %v205
    %v210 = vmul.f32 %v126, %v206
    %v211 = vmul.f32 %v132, %v207
    %v212 = vmul.f32 %v129, %v208
    %v213 = vmul.f32 %v133, %v209
    %v215 = vlaneseq
    %v216 = vshrl.u32 %v215, 7
    %v217 = vsub.s32 0, %v216
    %v218 = vrot.slane %v179, %v217
    %v220 = vmul.f32 %v210, %v218
    %v221 = vmul.f32 %v211, %v218
    %v222 = vmul.f32 %v212, %v218
    %v223 = vmul.f32 %v213, %v218
    %v224 = vpack.c.bf16 %v221, %v220
    %v225 = vpack.c.bf16 %v223, %v222
    %v226 = vld [vmem:[%s6] sm:$0xff]
    %v227 = vld [vmem:[%s6 + $0x8] sm:$0xff]
    %v228 = vld [vmem:[%s6 + $0x10] sm:$0xff]
    %v229 = vld [vmem:[%s6 + $0x18] sm:$0xff]
    %v230 = vld [vmem:[%s6 + $0x20] sm:$0xff]
    %v231 = vld [vmem:[%s6 + $0x28] sm:$0xff]
    %v232 = vld [vmem:[%s6 + $0x30] sm:$0xff]
    %v233 = vld [vmem:[%s6 + $0x38] sm:$0xff]
    %v234 = vld [vmem:[%s7] sm:$0x3]
    %v236 = vlaneseq
    %v237 = vshrl.u32 %v236, 7
    %v238 = vsub.s32 0, %v237
    %v239 = vrot.slane %v234, %v238
    %v240 = vlaneseq
    %v241 = vshrl.u32 %v240, 7
    %v242 = vsub.s32 1, %v241
    %v243 = vrot.slane %v234, %v242
    %v254 = vunpack.c.l.b16 %v226
    %v255 = vunpack.c.h.b16 %v226
    %v256 = vunpack.c.l.b16 %v227
    %v257 = vunpack.c.h.b16 %v227
    %v258 = vunpack.c.l.b16 %v228
    %v259 = vunpack.c.h.b16 %v228
    %v260 = vunpack.c.l.b16 %v229
    %v261 = vunpack.c.h.b16 %v229
    %v262 = vunpack.c.l.b16 %v230
    %v263 = vunpack.c.h.b16 %v230
    %v264 = vunpack.c.l.b16 %v231
    %v265 = vunpack.c.h.b16 %v231
    %v266 = vunpack.c.l.b16 %v232
    %v267 = vunpack.c.h.b16 %v232
    %v268 = vunpack.c.l.b16 %v233
    %v269 = vunpack.c.h.b16 %v233
    %v270 = vpack.c.b16 %v256, %v254
    %v271 = vpack.c.b16 %v257, %v255
    %v272 = vpack.c.b16 %v260, %v258
    %v273 = vpack.c.b16 %v261, %v259
    %v274 = vpack.c.b16 %v264, %v262
    %v275 = vpack.c.b16 %v265, %v263
    %v276 = vpack.c.b16 %v268, %v266
    %v277 = vpack.c.b16 %v269, %v267
    %v287 = vsel %vm184, %v224, 0
    %v290 = vsel %vm184, %v225, 0
    %292 = vmatprep.subr.bf16.mxu0 0
    %293 = vmatpush1.bf16.msra.mxu0 0
    %294 = vmatprep.subr.bf16.mxu0 0
    %295 = vmatpush1.bf16.msra.mxu0 0
    %296 = vmatprep.subr.bf16.mxu0 0
    %297 = vmatpush1.bf16.msra.mxu0 0
    %298 = vmatprep.subr.bf16.mxu0 0
    %299 = vmatpush1.bf16.msra.mxu0 0
    %300 = vmatprep.subr.bf16.mxu0 %v277
    %301 = vmatpush1.bf16.msra.mxu0 %v276
    %302 = vmatprep.subr.bf16.mxu0 %v275
    %303 = vmatpush1.bf16.msra.mxu0 %v274
    %304 = vmatprep.subr.bf16.mxu0 %v273
    %305 = vmatpush1.bf16.msra.mxu0 %v272
    %306 = vmatprep.subr.bf16.mxu0 %v271
    %307 = vmatpush1.bf16.msra.mxu0 %v270
    %308 = vmatprep.subr.bf16.mxu0 0
    %309 = vmatpush2.bf16.msra.mxu0 0
    %310 = vmatprep.subr.bf16.mxu0 0
    %311 = vmatpush2.bf16.msra.mxu0 0
    %312 = vmatprep.subr.bf16.mxu0 0
    %313 = vmatpush2.bf16.msra.mxu0 0
    %314 = vmatprep.subr.bf16.mxu0 0
    %315 = vmatpush2.bf16.msra.mxu0 0
    %316 = vmatprep.subr.bf16.mxu0 0
    %317 = vmatpush2.bf16.msra.mxu0 0
    %318 = vmatprep.subr.bf16.mxu0 0
    %319 = vmatpush2.bf16.msra.mxu0 0
    %320 = vmatprep.subr.bf16.mxu0 0
    %321 = vmatpush2.bf16.msra.mxu0 0
    %322 = vmatprep.subr.bf16.mxu0 0
    %323 = vmatpush2.bf16.msra.mxu0 0
    %324 = vmatprep.mubr.bf16.mxu0 0
    %325 = vmatmul.mubr.bf16.gmra.mxu0 %v287
    %v326 = vpop.f32.mrf.mxu0
    %v327 = vadd.f32 %v239, %v326
    %v328 = vpop.f32.mrf.mxu0
    %v329 = vadd.f32 %v243, %v328
    %v330 = vpop.f32.mrf.mxu0
    %v331 = vadd.f32 %v239, %v330
    %v332 = vpop.f32.mrf.mxu0
    %v333 = vadd.f32 %v243, %v332
    %334 = vmatprep.mubr.bf16.mxu0 0
    %335 = vmatmul.mubr.bf16.gmra.mxu0 %v290
    %v336 = vpop.f32.mrf.mxu0
    %v337 = vadd.f32 %v239, %v336
    %v338 = vpop.f32.mrf.mxu0
    %v339 = vadd.f32 %v243, %v338
    %v340 = vpop.f32.mrf.mxu0
    %v341 = vadd.f32 %v239, %v340
    %v342 = vpop.f32.mrf.mxu0
    %v343 = vadd.f32 %v243, %v342
    %344 = vdwg.mxu0
    %v345 = vpack.c.bf16 %v331, %v327
    %v346 = vpack.c.bf16 %v333, %v329
    %v347 = vpack.c.bf16 %v341, %v337
    %v348 = vpack.c.bf16 %v343, %v339
    %351 = vrot.lane.b32.xlu0 %v345, 64
    %v352 = vpop.permute.xlu0 %351
    %353 = vrot.lane.b32.xlu0 %v347, 64
    %v354 = vpop.permute.xlu0 %353
    %vm355 = vcmask 261120
    %v357 = vsel %vm355, %v345, 0
    %v360 = vsel %vm355, %v347, 0
    %v363 = vsel %vm355, %v352, 0
    %v366 = vsel %vm355, %v354, 0
    %368 = vmatprep.subr.bf16.mxu0 0
    %369 = vmatpush1.bf16.xpose.msra.mxu0 0
    %370 = vmatprep.subr.bf16.mxu0 0
    %371 = vmatpush1.bf16.xpose.msra.mxu0 0
    %372 = vmatprep.subr.bf16.mxu0 0
    %373 = vmatpush1.bf16.xpose.msra.mxu0 0
    %374 = vmatprep.subr.bf16.mxu0 0
    %375 = vmatpush1.bf16.xpose.msra.mxu0 0
    %376 = vmatprep.subr.bf16.mxu0 0
    %377 = vmatpush1.bf16.xpose.msra.mxu0 0
    %378 = vmatprep.subr.bf16.mxu0 0
    %379 = vmatpush1.bf16.xpose.msra.mxu0 0
    %380 = vmatprep.subr.bf16.mxu0 0
    %381 = vmatpush1.bf16.xpose.msra.mxu0 %v366
    %382 = vmatprep.subr.bf16.mxu0 0
    %383 = vmatpush1.bf16.xpose.msra.mxu0 %v363
    %384 = vmatprep.subr.bf16.mxu0 0
    %385 = vmatpush2.bf16.xpose.msra.mxu0 0
    %386 = vmatprep.subr.bf16.mxu0 0
    %387 = vmatpush2.bf16.xpose.msra.mxu0 0
    %388 = vmatprep.subr.bf16.mxu0 0
    %389 = vmatpush2.bf16.xpose.msra.mxu0 0
    %390 = vmatprep.subr.bf16.mxu0 0
    %391 = vmatpush2.bf16.xpose.msra.mxu0 0
    %392 = vmatprep.subr.bf16.mxu0 0
    %393 = vmatpush2.bf16.xpose.msra.mxu0 0
    %394 = vmatprep.subr.bf16.mxu0 0
    %395 = vmatpush2.bf16.xpose.msra.mxu0 0
    %396 = vmatprep.subr.bf16.mxu0 0
    %397 = vmatpush2.bf16.xpose.msra.mxu0 0
    %398 = vmatprep.subr.bf16.mxu0 0
    %399 = vmatpush2.bf16.xpose.msra.mxu0 0
    %400 = vmatprep.mubr.bf16.mxu0 0
    %401 = vmatmul.mubr.bf16.gmra.mxu0 %v357
    %v402 = vpop.f32.mrf.mxu0
    %v403 = vadd.f32 0.0, %v402
    %v404 = vpop.f32.mrf.mxu0
    %v405 = vpop.f32.mrf.mxu0
    %v406 = vadd.f32 0.0, %v405
    %v407 = vpop.f32.mrf.mxu0
    %408 = vmatprep.mubr.bf16.mxu0 0
    %409 = vmatmul.mubr.bf16.gmra.mxu0 %v360
    %v410 = vpop.f32.mrf.mxu0
    %v411 = vadd.f32 0.0, %v410
    %v412 = vpop.f32.mrf.mxu0
    %v413 = vpop.f32.mrf.mxu0
    %v414 = vadd.f32 0.0, %v413
    %v415 = vpop.f32.mrf.mxu0
    %416 = vdwg.mxu0
    %v417 = vmul.f32 %v403, 0.17677669
    %v418 = vmul.f32 %v406, 0.17677669
    %v419 = vmul.f32 %v411, 0.17677669
    %v420 = vmul.f32 %v414, 0.17677669
    %v421 = vadd.f32 %v417, %v175
    %v422 = vadd.f32 %v418, %v176
    %v423 = vadd.f32 %v419, %v177
    %v424 = vadd.f32 %v420, %v178
    %v425 = vsel %vm355, %v421, -inf
    %426 = vmax.xlane.f32.xlu0 %v425
    %v427 = vpop.xlane.xlu0 %426
    %v428 = vsel %vm355, %v422, -inf
    %429 = vmax.xlane.f32.xlu0 %v428
    %v430 = vpop.xlane.xlu0 %429
    %v431 = vsel %vm355, %v423, -inf
    %432 = vmax.xlane.f32.xlu0 %v431
    %v433 = vpop.xlane.xlu0 %432
    %v434 = vsel %vm355, %v424, -inf
    %435 = vmax.xlane.f32.xlu0 %v434
    %v436 = vpop.xlane.xlu0 %435
    %v437 = vsub.f32 %v421, %v427
    %v438 = vsub.f32 %v422, %v430
    %v439 = vsub.f32 %v423, %v433
    %v440 = vsub.f32 %v424, %v436
    %v441 = vmul.f32 %v437, 1.442695
    %v442 = vpow.pop %v441
    %v443 = vmul.f32 %v438, 1.442695
    %v444 = vpow.pop %v443
    %v445 = vmul.f32 %v439, 1.442695
    %v446 = vpow.pop %v445
    %v447 = vmul.f32 %v440, 1.442695
    %v448 = vpow.pop %v447
    %v449 = vsel %vm355, %v442, 0.0
    %450 = vadd.xlane.f32.xlu0 %v449
    %v451 = vpop.xlane.xlu0 %450
    %v452 = vsel %vm355, %v444, 0.0
    %453 = vadd.xlane.f32.xlu0 %v452
    %v454 = vpop.xlane.xlu0 %453
    %v455 = vsel %vm355, %v446, 0.0
    %456 = vadd.xlane.f32.xlu0 %v455
    %v457 = vpop.xlane.xlu0 %456
    %v458 = vsel %vm355, %v448, 0.0
    %459 = vadd.xlane.f32.xlu0 %v458
    %v460 = vpop.xlane.xlu0 %459
    %v461 = vrcp.pop %v451
    %v462 = vrcp.pop %v454
    %v463 = vrcp.pop %v457
    %v464 = vrcp.pop %v460
    %v465 = vmul.f32 %v442, %v461
    %v466 = vmul.f32 %v444, %v462
    %v467 = vmul.f32 %v446, %v463
    %v468 = vmul.f32 %v448, %v464
    %v469 = vpack.c.bf16 %v466, %v465
    %v470 = vpack.c.bf16 %v468, %v467
    %v472 = vsel %vm355, %v469, 0
    %v475 = vsel %vm355, %v470, 0
    %477 = vmatprep.subr.bf16.mxu0 0
    %478 = vmatpush1.bf16.msra.mxu0 0
    %479 = vmatprep.subr.bf16.mxu0 0
    %480 = vmatpush1.bf16.msra.mxu0 0
    %481 = vmatprep.subr.bf16.mxu0 0
    %482 = vmatpush1.bf16.msra.mxu0 0
    %483 = vmatprep.subr.bf16.mxu0 0
    %484 = vmatpush1.bf16.msra.mxu0 0
    %485 = vmatprep.subr.bf16.mxu0 0
    %486 = vmatpush1.bf16.msra.mxu0 0
    %487 = vmatprep.subr.bf16.mxu0 0
    %488 = vmatpush1.bf16.msra.mxu0 0
    %489 = vmatprep.subr.bf16.mxu0 0
    %490 = vmatpush1.bf16.msra.mxu0 %v348
    %491 = vmatprep.subr.bf16.mxu0 0
    %492 = vmatpush1.bf16.msra.mxu0 %v346
    %493 = vmatprep.subr.bf16.mxu0 0
    %494 = vmatpush2.bf16.msra.mxu0 0
    %495 = vmatprep.subr.bf16.mxu0 0
    %496 = vmatpush2.bf16.msra.mxu0 0
    %497 = vmatprep.subr.bf16.mxu0 0
    %498 = vmatpush2.bf16.msra.mxu0 0
    %499 = vmatprep.subr.bf16.mxu0 0
    %500 = vmatpush2.bf16.msra.mxu0 0
    %501 = vmatprep.subr.bf16.mxu0 0
    %502 = vmatpush2.bf16.msra.mxu0 0
    %503 = vmatprep.subr.bf16.mxu0 0
    %504 = vmatpush2.bf16.msra.mxu0 0
    %505 = vmatprep.subr.bf16.mxu0 0
    %506 = vmatpush2.bf16.msra.mxu0 0
    %507 = vmatprep.subr.bf16.mxu0 0
    %508 = vmatpush2.bf16.msra.mxu0 0
    %509 = vmatprep.mubr.bf16.mxu0 0
    %510 = vmatmul.mubr.bf16.gmra.mxu0 %v472
    %v511 = vpop.f32.mrf.mxu0
    %v512 = vadd.f32 0.0, %v511
    %v513 = vpop.f32.mrf.mxu0
    %v514 = vpop.f32.mrf.mxu0
    %v515 = vadd.f32 0.0, %v514
    %v516 = vpop.f32.mrf.mxu0
    %517 = vmatprep.mubr.bf16.mxu0 0
    %518 = vmatmul.mubr.bf16.gmra.mxu0 %v475
    %v519 = vpop.f32.mrf.mxu0
    %v520 = vadd.f32 0.0, %v519
    %v521 = vpop.f32.mrf.mxu0
    %v522 = vpop.f32.mrf.mxu0
    %v523 = vadd.f32 0.0, %v522
    %v524 = vpop.f32.mrf.mxu0
    %525 = vdwg.mxu0
    %526 = vrot.lane.b32.xlu0 %v345, 96
    %v527 = vpop.permute.xlu0 %526
    %528 = vrot.lane.b32.xlu0 %v347, 96
    %v529 = vpop.permute.xlu0 %528
    %530 = vrot.lane.b32.xlu0 %v345, 32
    %v531 = vpop.permute.xlu0 %530
    %532 = vrot.lane.b32.xlu0 %v347, 32
    %v533 = vpop.permute.xlu0 %532
    %v535 = vsel %vm355, %v527, 0
    %v538 = vsel %vm355, %v529, 0
    %v541 = vsel %vm355, %v531, 0
    %v544 = vsel %vm355, %v533, 0
    %546 = vmatprep.subr.bf16.mxu0 0
    %547 = vmatpush1.bf16.xpose.msra.mxu0 0
    %548 = vmatprep.subr.bf16.mxu0 0
    %549 = vmatpush1.bf16.xpose.msra.mxu0 0
    %550 = vmatprep.subr.bf16.mxu0 0
    %551 = vmatpush1.bf16.xpose.msra.mxu0 0
    %552 = vmatprep.subr.bf16.mxu0 0
    %553 = vmatpush1.bf16.xpose.msra.mxu0 0
    %554 = vmatprep.subr.bf16.mxu0 0
    %555 = vmatpush1.bf16.xpose.msra.mxu0 0
    %556 = vmatprep.subr.bf16.mxu0 0
    %557 = vmatpush1.bf16.xpose.msra.mxu0 0
    %558 = vmatprep.subr.bf16.mxu0 0
    %559 = vmatpush1.bf16.xpose.msra.mxu0 %v544
    %560 = vmatprep.subr.bf16.mxu0 0
    %561 = vmatpush1.bf16.xpose.msra.mxu0 %v541
    %562 = vmatprep.subr.bf16.mxu0 0
    %563 = vmatpush2.bf16.xpose.msra.mxu0 0
    %564 = vmatprep.subr.bf16.mxu0 0
    %565 = vmatpush2.bf16.xpose.msra.mxu0 0
    %566 = vmatprep.subr.bf16.mxu0 0
    %567 = vmatpush2.bf16.xpose.msra.mxu0 0
    %568 = vmatprep.subr.bf16.mxu0 0
    %569 = vmatpush2.bf16.xpose.msra.mxu0 0
    %570 = vmatprep.subr.bf16.mxu0 0
    %571 = vmatpush2.bf16.xpose.msra.mxu0 0
    %572 = vmatprep.subr.bf16.mxu0 0
    %573 = vmatpush2.bf16.xpose.msra.mxu0 0
    %574 = vmatprep.subr.bf16.mxu0 0
    %575 = vmatpush2.bf16.xpose.msra.mxu0 0
    %576 = vmatprep.subr.bf16.mxu0 0
    %577 = vmatpush2.bf16.xpose.msra.mxu0 0
    %578 = vmatprep.mubr.bf16.mxu0 0
    %579 = vmatmul.mubr.bf16.gmra.mxu0 %v535
    %v580 = vpop.f32.mrf.mxu0
    %v581 = vadd.f32 0.0, %v580
    %v582 = vpop.f32.mrf.mxu0
    %v583 = vpop.f32.mrf.mxu0
    %v584 = vadd.f32 0.0, %v583
    %v585 = vpop.f32.mrf.mxu0
    %586 = vmatprep.mubr.bf16.mxu0 0
    %587 = vmatmul.mubr.bf16.gmra.mxu0 %v538
    %v588 = vpop.f32.mrf.mxu0
    %v589 = vadd.f32 0.0, %v588
    %v590 = vpop.f32.mrf.mxu0
    %v591 = vpop.f32.mrf.mxu0
    %v592 = vadd.f32 0.0, %v591
    %v593 = vpop.f32.mrf.mxu0
    %594 = vdwg.mxu0
    %v595 = vmul.f32 %v581, 0.17677669
    %v596 = vmul.f32 %v584, 0.17677669
    %v597 = vmul.f32 %v589, 0.17677669
    %v598 = vmul.f32 %v592, 0.17677669
    %v599 = vadd.f32 %v595, %v175
    %v600 = vadd.f32 %v596, %v176
    %v601 = vadd.f32 %v597, %v177
    %v602 = vadd.f32 %v598, %v178
    %v603 = vsel %vm355, %v599, -inf
    %604 = vmax.xlane.f32.xlu0 %v603
    %v605 = vpop.xlane.xlu0 %604
    %v606 = vsel %vm355, %v600, -inf
    %607 = vmax.xlane.f32.xlu0 %v606
    %v608 = vpop.xlane.xlu0 %607
    %v609 = vsel %vm355, %v601, -inf
    %610 = vmax.xlane.f32.xlu0 %v609
    %v611 = vpop.xlane.xlu0 %610
    %v612 = vsel %vm355, %v602, -inf
    %613 = vmax.xlane.f32.xlu0 %v612
    %v614 = vpop.xlane.xlu0 %613
    %v615 = vsub.f32 %v599, %v605
    %v616 = vsub.f32 %v600, %v608
    %v617 = vsub.f32 %v601, %v611
    %v618 = vsub.f32 %v602, %v614
    %v619 = vmul.f32 %v615, 1.442695
    %v620 = vpow.pop %v619
    %v621 = vmul.f32 %v616, 1.442695
    %v622 = vpow.pop %v621
    %v623 = vmul.f32 %v617, 1.442695
    %v624 = vpow.pop %v623
    %v625 = vmul.f32 %v618, 1.442695
    %v626 = vpow.pop %v625
    %v627 = vsel %vm355, %v620, 0.0
    %628 = vadd.xlane.f32.xlu0 %v627
    %v629 = vpop.xlane.xlu0 %628
    %v630 = vsel %vm355, %v622, 0.0
    %631 = vadd.xlane.f32.xlu0 %v630
    %v632 = vpop.xlane.xlu0 %631
    %v633 = vsel %vm355, %v624, 0.0
    %634 = vadd.xlane.f32.xlu0 %v633
    %v635 = vpop.xlane.xlu0 %634
    %v636 = vsel %vm355, %v626, 0.0
    %637 = vadd.xlane.f32.xlu0 %v636
    %v638 = vpop.xlane.xlu0 %637
    %v639 = vrcp.pop %v629
    %v640 = vrcp.pop %v632
    %v641 = vrcp.pop %v635
    %v642 = vrcp.pop %v638
    %v643 = vmul.f32 %v620, %v639
    %v644 = vmul.f32 %v622, %v640
    %v645 = vmul.f32 %v624, %v641
    %v646 = vmul.f32 %v626, %v642
    %v647 = vpack.c.bf16 %v644, %v643
    %v648 = vpack.c.bf16 %v646, %v645
    %651 = vrot.lane.b32.xlu0 %v346, 96
    %v652 = vpop.permute.xlu0 %651
    %653 = vrot.lane.b32.xlu0 %v348, 96
    %v654 = vpop.permute.xlu0 %653
    %v658 = vsel %vm355, %v647, 0
    %v661 = vsel %vm355, %v648, 0
    %663 = vmatprep.subr.bf16.mxu0 0
    %664 = vmatpush1.bf16.msra.mxu0 0
    %665 = vmatprep.subr.bf16.mxu0 0
    %666 = vmatpush1.bf16.msra.mxu0 0
    %667 = vmatprep.subr.bf16.mxu0 0
    %668 = vmatpush1.bf16.msra.mxu0 0
    %669 = vmatprep.subr.bf16.mxu0 0
    %670 = vmatpush1.bf16.msra.mxu0 0
    %671 = vmatprep.subr.bf16.mxu0 0
    %672 = vmatpush1.bf16.msra.mxu0 0
    %673 = vmatprep.subr.bf16.mxu0 0
    %674 = vmatpush1.bf16.msra.mxu0 0
    %675 = vmatprep.subr.bf16.mxu0 0
    %676 = vmatpush1.bf16.msra.mxu0 %v654
    %677 = vmatprep.subr.bf16.mxu0 0
    %678 = vmatpush1.bf16.msra.mxu0 %v652
    %679 = vmatprep.subr.bf16.mxu0 0
    %680 = vmatpush2.bf16.msra.mxu0 0
    %681 = vmatprep.subr.bf16.mxu0 0
    %682 = vmatpush2.bf16.msra.mxu0 0
    %683 = vmatprep.subr.bf16.mxu0 0
    %684 = vmatpush2.bf16.msra.mxu0 0
    %685 = vmatprep.subr.bf16.mxu0 0
    %686 = vmatpush2.bf16.msra.mxu0 0
    %687 = vmatprep.subr.bf16.mxu0 0
    %688 = vmatpush2.bf16.msra.mxu0 0
    %689 = vmatprep.subr.bf16.mxu0 0
    %690 = vmatpush2.bf16.msra.mxu0 0
    %691 = vmatprep.subr.bf16.mxu0 0
    %692 = vmatpush2.bf16.msra.mxu0 0
    %693 = vmatprep.subr.bf16.mxu0 0
    %694 = vmatpush2.bf16.msra.mxu0 0
    %695 = vmatprep.mubr.bf16.mxu0 0
    %696 = vmatmul.mubr.bf16.gmra.mxu0 %v658
    %v697 = vpop.f32.mrf.mxu0
    %v698 = vadd.f32 0.0, %v697
    %v699 = vpop.f32.mrf.mxu0
    %v700 = vpop.f32.mrf.mxu0
    %v701 = vadd.f32 0.0, %v700
    %v702 = vpop.f32.mrf.mxu0
    %703 = vmatprep.mubr.bf16.mxu0 0
    %704 = vmatmul.mubr.bf16.gmra.mxu0 %v661
    %v705 = vpop.f32.mrf.mxu0
    %v706 = vadd.f32 0.0, %v705
    %v707 = vpop.f32.mrf.mxu0
    %v708 = vpop.f32.mrf.mxu0
    %v709 = vadd.f32 0.0, %v708
    %v710 = vpop.f32.mrf.mxu0
    %711 = vdwg.mxu0
    %716 = vrot.lane.b32.xlu0 %v698, 32
    %v717 = vpop.permute.xlu0 %716
    %718 = vrot.lane.b32.xlu0 %v701, 32
    %v719 = vpop.permute.xlu0 %718
    %720 = vrot.lane.b32.xlu0 %v706, 32
    %v721 = vpop.permute.xlu0 %720
    %722 = vrot.lane.b32.xlu0 %v709, 32
    %v723 = vpop.permute.xlu0 %722
    %v728 = vsel %vm355, %v512, %v717
    %v729 = vsel %vm355, %v515, %v719
    %v730 = vsel %vm355, %v520, %v721
    %v731 = vsel %vm355, %v523, %v723
    %v732 = vpack.c.bf16 %v729, %v728
    %v733 = vpack.c.bf16 %v731, %v730
    %v734 = vld [vmem:[%s8] sm:$0xf]
    %v735 = vld [vmem:[%s8 + $0x4] sm:$0xf]
    %v736 = vld [vmem:[%s8 + $0x8] sm:$0xf]
    %v737 = vld [vmem:[%s8 + $0xc] sm:$0xf]
    %v738 = vld [vmem:[%s8 + $0x10] sm:$0xf]
    %v739 = vld [vmem:[%s8 + $0x14] sm:$0xf]
    %v740 = vld [vmem:[%s8 + $0x18] sm:$0xf]
    %v741 = vld [vmem:[%s8 + $0x1c] sm:$0xf]
    %v750 = vunpack.c.l.b16 %v734
    %v751 = vunpack.c.l.b16 %v735
    %v752 = vunpack.c.l.b16 %v736
    %v753 = vunpack.c.l.b16 %v737
    %v754 = vunpack.c.l.b16 %v738
    %v755 = vunpack.c.l.b16 %v739
    %v756 = vunpack.c.l.b16 %v740
    %v757 = vunpack.c.l.b16 %v741
    %v758 = vpack.c.b16 %v751, %v750
    %v759 = vpack.c.b16 %v753, %v752
    %v760 = vpack.c.b16 %v755, %v754
    %v761 = vpack.c.b16 %v757, %v756
    %v767 = vsel %vm184, %v732, 0
    %v770 = vsel %vm184, %v733, 0
    %772 = vmatprep.subr.bf16.mxu0 0
    %773 = vmatpush1.bf16.msra.mxu0 0
    %774 = vmatprep.subr.bf16.mxu0 0
    %775 = vmatpush1.bf16.msra.mxu0 0
    %776 = vmatprep.subr.bf16.mxu0 0
    %777 = vmatpush1.bf16.msra.mxu0 0
    %778 = vmatprep.subr.bf16.mxu0 0
    %779 = vmatpush1.bf16.msra.mxu0 0
    %780 = vmatprep.subr.bf16.mxu0 0
    %781 = vmatpush1.bf16.msra.mxu0 %v761
    %782 = vmatprep.subr.bf16.mxu0 0
    %783 = vmatpush1.bf16.msra.mxu0 %v760
    %784 = vmatprep.subr.bf16.mxu0 0
    %785 = vmatpush1.bf16.msra.mxu0 %v759
    %786 = vmatprep.subr.bf16.mxu0 0
    %787 = vmatpush1.bf16.msra.mxu0 %v758
    %788 = vmatprep.subr.bf16.mxu0 0
    %789 = vmatpush2.bf16.msra.mxu0 0
    %790 = vmatprep.subr.bf16.mxu0 0
    %791 = vmatpush2.bf16.msra.mxu0 0
    %792 = vmatprep.subr.bf16.mxu0 0
    %793 = vmatpush2.bf16.msra.mxu0 0
    %794 = vmatprep.subr.bf16.mxu0 0
    %795 = vmatpush2.bf16.msra.mxu0 0
    %796 = vmatprep.subr.bf16.mxu0 0
    %797 = vmatpush2.bf16.msra.mxu0 0
    %798 = vmatprep.subr.bf16.mxu0 0
    %799 = vmatpush2.bf16.msra.mxu0 0
    %800 = vmatprep.subr.bf16.mxu0 0
    %801 = vmatpush2.bf16.msra.mxu0 0
    %802 = vmatprep.subr.bf16.mxu0 0
    %803 = vmatpush2.bf16.msra.mxu0 0
    %804 = vmatprep.mubr.bf16.mxu0 0
    %805 = vmatmul.mubr.bf16.gmra.mxu0 %v767
    %v806 = vpop.f32.mrf.mxu0
    %v807 = vadd.f32 0.0, %v806
    %v808 = vpop.f32.mrf.mxu0
    %v809 = vpop.f32.mrf.mxu0
    %v810 = vadd.f32 0.0, %v809
    %v811 = vpop.f32.mrf.mxu0
    %812 = vmatprep.mubr.bf16.mxu0 0
    %813 = vmatmul.mubr.bf16.gmra.mxu0 %v770
    %v814 = vpop.f32.mrf.mxu0
    %v815 = vadd.f32 0.0, %v814
    %v816 = vpop.f32.mrf.mxu0
    %v817 = vpop.f32.mrf.mxu0
    %v818 = vadd.f32 0.0, %v817
    %v819 = vpop.f32.mrf.mxu0
    %820 = vdwg.mxu0
    %v821 = vadd.f32 %v126, %v807
    %v822 = vadd.f32 %v132, %v810
    %v823 = vadd.f32 %v129, %v815
    %v824 = vadd.f32 %v133, %v818
    %v825 = vld [vmem:[%s9] sm:$0x1]
    %v826 = vmul.f32 %v821, %v821
    %v827 = vmul.f32 %v822, %v822
    %v828 = vmul.f32 %v823, %v823
    %v829 = vmul.f32 %v824, %v824
    %v830 = vsel %vm184, %v826, 0.0
    %831 = vadd.xlane.f32.xlu0 %v830
    %v832 = vpop.xlane.xlu0 %831
    %v833 = vsel %vm184, %v827, 0.0
    %834 = vadd.xlane.f32.xlu0 %v833
    %v835 = vpop.xlane.xlu0 %834
    %v836 = vsel %vm184, %v828, 0.0
    %837 = vadd.xlane.f32.xlu0 %v836
    %v838 = vpop.xlane.xlu0 %837
    %v839 = vsel %vm184, %v829, 0.0
    %840 = vadd.xlane.f32.xlu0 %v839
    %v841 = vpop.xlane.xlu0 %840
    %v842 = vmul.f32 %v832, %v197
    %v843 = vmul.f32 %v835, %v197
    %v844 = vmul.f32 %v838, %v197
    %v845 = vmul.f32 %v841, %v197
    %v846 = vadd.f32 %v842, 1e-06
    %v847 = vadd.f32 %v843, 1e-06
    %v848 = vadd.f32 %v844, 1e-06
    %v849 = vadd.f32 %v845, 1e-06
    %v850 = vrsqrt.pop %v846
    %v851 = vrsqrt.pop %v847
    %v852 = vrsqrt.pop %v848
    %v853 = vrsqrt.pop %v849
    %v854 = vmul.f32 %v821, %v850
    %v855 = vmul.f32 %v822, %v851
    %v856 = vmul.f32 %v823, %v852
    %v857 = vmul.f32 %v824, %v853
    %v859 = vlaneseq
    %v860 = vshrl.u32 %v859, 7
    %v861 = vsub.s32 0, %v860
    %v862 = vrot.slane %v825, %v861
    %v864 = vmul.f32 %v854, %v862
    %v865 = vmul.f32 %v855, %v862
    %v866 = vmul.f32 %v856, %v862
    %v867 = vmul.f32 %v857, %v862
    %v868 = vpack.c.bf16 %v865, %v864
    %v869 = vpack.c.bf16 %v867, %v866
    %v870 = vld [vmem:[%s10] sm:$0xff]
    %v871 = vld [vmem:[%s10 + $0x8] sm:$0xff]
    %v872 = vld [vmem:[%s10 + $0x10] sm:$0xff]
    %v873 = vld [vmem:[%s10 + $0x18] sm:$0xff]
    %v874 = vld [vmem:[%s10 + $0x20] sm:$0xff]
    %v875 = vld [vmem:[%s10 + $0x28] sm:$0xff]
    %v876 = vld [vmem:[%s10 + $0x30] sm:$0xff]
    %v877 = vld [vmem:[%s10 + $0x38] sm:$0xff]
    %v886 = vunpack.c.l.b16 %v870
    %v887 = vunpack.c.h.b16 %v870
    %v888 = vunpack.c.l.b16 %v871
    %v889 = vunpack.c.h.b16 %v871
    %v890 = vunpack.c.l.b16 %v872
    %v891 = vunpack.c.h.b16 %v872
    %v892 = vunpack.c.l.b16 %v873
    %v893 = vunpack.c.h.b16 %v873
    %v894 = vunpack.c.l.b16 %v874
    %v895 = vunpack.c.h.b16 %v874
    %v896 = vunpack.c.l.b16 %v875
    %v897 = vunpack.c.h.b16 %v875
    %v898 = vunpack.c.l.b16 %v876
    %v899 = vunpack.c.h.b16 %v876
    %v900 = vunpack.c.l.b16 %v877
    %v901 = vunpack.c.h.b16 %v877
    %v902 = vpack.c.b16 %v888, %v886
    %v903 = vpack.c.b16 %v889, %v887
    %v904 = vpack.c.b16 %v892, %v890
    %v905 = vpack.c.b16 %v893, %v891
    %v906 = vpack.c.b16 %v896, %v894
    %v907 = vpack.c.b16 %v897, %v895
    %v908 = vpack.c.b16 %v900, %v898
    %v909 = vpack.c.b16 %v901, %v899
    %v919 = vsel %vm184, %v868, 0
    %v922 = vsel %vm184, %v869, 0
    %924 = vmatprep.subr.bf16.mxu0 0
    %925 = vmatpush1.bf16.msra.mxu0 0
    %926 = vmatprep.subr.bf16.mxu0 0
    %927 = vmatpush1.bf16.msra.mxu0 0
    %928 = vmatprep.subr.bf16.mxu0 0
    %929 = vmatpush1.bf16.msra.mxu0 0
    %930 = vmatprep.subr.bf16.mxu0 0
    %931 = vmatpush1.bf16.msra.mxu0 0
    %932 = vmatprep.subr.bf16.mxu0 %v909
    %933 = vmatpush1.bf16.msra.mxu0 %v908
    %934 = vmatprep.subr.bf16.mxu0 %v907
    %935 = vmatpush1.bf16.msra.mxu0 %v906
    %936 = vmatprep.subr.bf16.mxu0 %v905
    %937 = vmatpush1.bf16.msra.mxu0 %v904
    %938 = vmatprep.subr.bf16.mxu0 %v903
    %939 = vmatpush1.bf16.msra.mxu0 %v902
    %940 = vmatprep.subr.bf16.mxu0 0
    %941 = vmatpush2.bf16.msra.mxu0 0
    %942 = vmatprep.subr.bf16.mxu0 0
    %943 = vmatpush2.bf16.msra.mxu0 0
    %944 = vmatprep.subr.bf16.mxu0 0
    %945 = vmatpush2.bf16.msra.mxu0 0
    %946 = vmatprep.subr.bf16.mxu0 0
    %947 = vmatpush2.bf16.msra.mxu0 0
    %948 = vmatprep.subr.bf16.mxu0 0
    %949 = vmatpush2.bf16.msra.mxu0 0
    %950 = vmatprep.subr.bf16.mxu0 0
    %951 = vmatpush2.bf16.msra.mxu0 0
    %952 = vmatprep.subr.bf16.mxu0 0
    %953 = vmatpush2.bf16.msra.mxu0 0
    %954 = vmatprep.subr.bf16.mxu0 0
    %955 = vmatpush2.bf16.msra.mxu0 0
    %956 = vmatprep.mubr.bf16.mxu0 0
    %957 = vmatmul.mubr.bf16.gmra.mxu0 %v919
    %v958 = vpop.f32.mrf.mxu0
    %v959 = vadd.f32 0.0, %v958
    %v960 = vpop.f32.mrf.mxu0
    %v961 = vadd.f32 0.0, %v960
    %v962 = vpop.f32.mrf.mxu0
    %v963 = vadd.f32 0.0, %v962
    %v964 = vpop.f32.mrf.mxu0
    %v965 = vadd.f32 0.0, %v964
    %966 = vmatprep.mubr.bf16.mxu0 0
    %967 = vmatmul.mubr.bf16.gmra.mxu0 %v922
    %v968 = vpop.f32.mrf.mxu0
    %v969 = vadd.f32 0.0, %v968
    %v970 = vpop.f32.mrf.mxu0
    %v971 = vadd.f32 0.0, %v970
    %v972 = vpop.f32.mrf.mxu0
    %v973 = vadd.f32 0.0, %v972
    %v974 = vpop.f32.mrf.mxu0
    %v975 = vadd.f32 0.0, %v974
    %976 = vdwg.mxu0
    %v977 = vxor.u32 %v959, 2147483648
    %v978 = vxor.u32 %v963, 2147483648
    %v979 = vxor.u32 %v969, 2147483648
    %v980 = vxor.u32 %v973, 2147483648
    %v981 = vmul.f32 %v977, 1.442695
    %v982 = vpow.pop %v981
    %v983 = vmul.f32 %v978, 1.442695
    %v984 = vpow.pop %v983
    %v985 = vmul.f32 %v979, 1.442695
    %v986 = vpow.pop %v985
    %v987 = vmul.f32 %v980, 1.442695
    %v988 = vpow.pop %v987
    %v989 = vadd.f32 %v982, 1.0
    %v990 = vadd.f32 %v984, 1.0
    %v991 = vadd.f32 %v986, 1.0
    %v992 = vadd.f32 %v988, 1.0
    %v993 = vrcp.pop %v989
    %v994 = vmul.f32 1.0, %v993
    %v995 = vrcp.pop %v990
    %v996 = vmul.f32 1.0, %v995
    %v997 = vrcp.pop %v991
    %v998 = vmul.f32 1.0, %v997
    %v999 = vrcp.pop %v992
    %v1000 = vmul.f32 1.0, %v999
    %v1001 = vmul.f32 %v959, %v994
    %v1002 = vmul.f32 %v963, %v996
    %v1003 = vmul.f32 %v969, %v998
    %v1004 = vmul.f32 %v973, %v1000
    %v1005 = vmul.f32 %v1001, %v961
    %v1006 = vmul.f32 %v1002, %v965
    %v1007 = vmul.f32 %v1003, %v971
    %v1008 = vmul.f32 %v1004, %v975
    %v1009 = vpack.c.bf16 %v1006, %v1005
    %v1010 = vpack.c.bf16 %v1008, %v1007
    %v1011 = vld [vmem:[%s11] sm:$0xf]
    %v1012 = vld [vmem:[%s11 + $0x4] sm:$0xf]
    %v1013 = vld [vmem:[%s11 + $0x8] sm:$0xf]
    %v1014 = vld [vmem:[%s11 + $0xc] sm:$0xf]
    %v1015 = vld [vmem:[%s11 + $0x10] sm:$0xf]
    %v1016 = vld [vmem:[%s11 + $0x14] sm:$0xf]
    %v1017 = vld [vmem:[%s11 + $0x18] sm:$0xf]
    %v1018 = vld [vmem:[%s11 + $0x1c] sm:$0xf]
    %v1019 = vld [vmem:[%s11 + $0x20] sm:$0xf]
    %v1020 = vld [vmem:[%s11 + $0x24] sm:$0xf]
    %v1021 = vld [vmem:[%s11 + $0x28] sm:$0xf]
    %v1022 = vld [vmem:[%s11 + $0x2c] sm:$0xf]
    %v1023 = vld [vmem:[%s11 + $0x30] sm:$0xf]
    %v1024 = vld [vmem:[%s11 + $0x34] sm:$0xf]
    %v1025 = vld [vmem:[%s11 + $0x38] sm:$0xf]
    %v1026 = vld [vmem:[%s11 + $0x3c] sm:$0xf]
    %v1043 = vunpack.c.l.b16 %v1011
    %v1044 = vunpack.c.l.b16 %v1012
    %v1045 = vunpack.c.l.b16 %v1013
    %v1046 = vunpack.c.l.b16 %v1014
    %v1047 = vunpack.c.l.b16 %v1015
    %v1048 = vunpack.c.l.b16 %v1016
    %v1049 = vunpack.c.l.b16 %v1017
    %v1050 = vunpack.c.l.b16 %v1018
    %v1051 = vunpack.c.l.b16 %v1019
    %v1052 = vunpack.c.l.b16 %v1020
    %v1053 = vunpack.c.l.b16 %v1021
    %v1054 = vunpack.c.l.b16 %v1022
    %v1055 = vunpack.c.l.b16 %v1023
    %v1056 = vunpack.c.l.b16 %v1024
    %v1057 = vunpack.c.l.b16 %v1025
    %v1058 = vunpack.c.l.b16 %v1026
    %v1059 = vpack.c.b16 %v1044, %v1043
    %v1060 = vpack.c.b16 %v1046, %v1045
    %v1061 = vpack.c.b16 %v1048, %v1047
    %v1062 = vpack.c.b16 %v1050, %v1049
    %v1063 = vpack.c.b16 %v1052, %v1051
    %v1064 = vpack.c.b16 %v1054, %v1053
    %v1065 = vpack.c.b16 %v1056, %v1055
    %v1066 = vpack.c.b16 %v1058, %v1057
    %1075 = vmatprep.subr.bf16.mxu0 0
    %1076 = vmatpush1.bf16.msra.mxu0 %v1066
    %1077 = vmatprep.subr.bf16.mxu0 0
    %1078 = vmatpush1.bf16.msra.mxu0 %v1065
    %1079 = vmatprep.subr.bf16.mxu0 0
    %1080 = vmatpush1.bf16.msra.mxu0 %v1064
    %1081 = vmatprep.subr.bf16.mxu0 0
    %1082 = vmatpush1.bf16.msra.mxu0 %v1063
    %1083 = vmatprep.subr.bf16.mxu0 0
    %1084 = vmatpush1.bf16.msra.mxu0 %v1062
    %1085 = vmatprep.subr.bf16.mxu0 0
    %1086 = vmatpush1.bf16.msra.mxu0 %v1061
    %1087 = vmatprep.subr.bf16.mxu0 0
    %1088 = vmatpush1.bf16.msra.mxu0 %v1060
    %1089 = vmatprep.subr.bf16.mxu0 0
    %1090 = vmatpush1.bf16.msra.mxu0 %v1059
    %1091 = vmatprep.subr.bf16.mxu0 0
    %1092 = vmatpush2.bf16.msra.mxu0 0
    %1093 = vmatprep.subr.bf16.mxu0 0
    %1094 = vmatpush2.bf16.msra.mxu0 0
    %1095 = vmatprep.subr.bf16.mxu0 0
    %1096 = vmatpush2.bf16.msra.mxu0 0
    %1097 = vmatprep.subr.bf16.mxu0 0
    %1098 = vmatpush2.bf16.msra.mxu0 0
    %1099 = vmatprep.subr.bf16.mxu0 0
    %1100 = vmatpush2.bf16.msra.mxu0 0
    %1101 = vmatprep.subr.bf16.mxu0 0
    %1102 = vmatpush2.bf16.msra.mxu0 0
    %1103 = vmatprep.subr.bf16.mxu0 0
    %1104 = vmatpush2.bf16.msra.mxu0 0
    %1105 = vmatprep.subr.bf16.mxu0 0
    %1106 = vmatpush2.bf16.msra.mxu0 0
    %1107 = vmatprep.mubr.bf16.mxu0 0
    %1108 = vmatmul.mubr.bf16.gmra.mxu0 %v1009
    %v1109 = vpop.f32.mrf.mxu0
    %v1110 = vadd.f32 0.0, %v1109
    %v1111 = vpop.f32.mrf.mxu0
    %v1112 = vpop.f32.mrf.mxu0
    %v1113 = vadd.f32 0.0, %v1112
    %v1114 = vpop.f32.mrf.mxu0
    %1115 = vmatprep.mubr.bf16.mxu0 0
    %1116 = vmatmul.mubr.bf16.gmra.mxu0 %v1010
    %v1117 = vpop.f32.mrf.mxu0
    %v1118 = vadd.f32 0.0, %v1117
    %v1119 = vpop.f32.mrf.mxu0
    %v1120 = vpop.f32.mrf.mxu0
    %v1121 = vadd.f32 0.0, %v1120
    %v1122 = vpop.f32.mrf.mxu0
    %1123 = vdwg.mxu0
    %v1124 = vadd.f32 %v821, %v1110
    %v1125 = vadd.f32 %v822, %v1113
    %v1126 = vadd.f32 %v823, %v1118
    %v1127 = vadd.f32 %v824, %v1121
    %s1128 = scalar_lea.vmem %s5, 1
    %v1129 = vld [vmem:[%s1128] sm:$0x1]
    %v1130 = vmul.f32 %v1124, %v1124
    %v1131 = vmul.f32 %v1125, %v1125
    %v1132 = vmul.f32 %v1126, %v1126
    %v1133 = vmul.f32 %v1127, %v1127
    %v1134 = vsel %vm184, %v1130, 0.0
    %1135 = vadd.xlane.f32.xlu0 %v1134
    %v1136 = vpop.xlane.xlu0 %1135
    %v1137 = vsel %vm184, %v1131, 0.0
    %1138 = vadd.xlane.f32.xlu0 %v1137
    %v1139 = vpop.xlane.xlu0 %1138
    %v1140 = vsel %vm184, %v1132, 0.0
    %1141 = vadd.xlane.f32.xlu0 %v1140
    %v1142 = vpop.xlane.xlu0 %1141
    %v1143 = vsel %vm184, %v1133, 0.0
    %1144 = vadd.xlane.f32.xlu0 %v1143
    %v1145 = vpop.xlane.xlu0 %1144
    %v1146 = vmul.f32 %v1136, %v197
    %v1147 = vmul.f32 %v1139, %v197
    %v1148 = vmul.f32 %v1142, %v197
    %v1149 = vmul.f32 %v1145, %v197
    %v1150 = vadd.f32 %v1146, 1e-06
    %v1151 = vadd.f32 %v1147, 1e-06
    %v1152 = vadd.f32 %v1148, 1e-06
    %v1153 = vadd.f32 %v1149, 1e-06
    %v1154 = vrsqrt.pop %v1150
    %v1155 = vrsqrt.pop %v1151
    %v1156 = vrsqrt.pop %v1152
    %v1157 = vrsqrt.pop %v1153
    %v1158 = vmul.f32 %v1124, %v1154
    %v1159 = vmul.f32 %v1125, %v1155
    %v1160 = vmul.f32 %v1126, %v1156
    %v1161 = vmul.f32 %v1127, %v1157
    %v1163 = vlaneseq
    %v1164 = vshrl.u32 %v1163, 7
    %v1165 = vsub.s32 0, %v1164
    %v1166 = vrot.slane %v1129, %v1165
    %v1168 = vmul.f32 %v1158, %v1166
    %v1169 = vmul.f32 %v1159, %v1166
    %v1170 = vmul.f32 %v1160, %v1166
    %v1171 = vmul.f32 %v1161, %v1166
    %v1172 = vpack.c.bf16 %v1169, %v1168
    %v1173 = vpack.c.bf16 %v1171, %v1170
    %s1174 = scalar_lea.vmem %s6, 64
    %v1175 = vld [vmem:[%s1174] sm:$0xff]
    %v1176 = vld [vmem:[%s1174 + $0x8] sm:$0xff]
    %v1177 = vld [vmem:[%s1174 + $0x10] sm:$0xff]
    %v1178 = vld [vmem:[%s1174 + $0x18] sm:$0xff]
    %v1179 = vld [vmem:[%s1174 + $0x20] sm:$0xff]
    %v1180 = vld [vmem:[%s1174 + $0x28] sm:$0xff]
    %v1181 = vld [vmem:[%s1174 + $0x30] sm:$0xff]
    %v1182 = vld [vmem:[%s1174 + $0x38] sm:$0xff]
    %s1183 = scalar_lea.vmem %s7, 2
    %v1184 = vld [vmem:[%s1183] sm:$0x3]
    %v1186 = vlaneseq
    %v1187 = vshrl.u32 %v1186, 7
    %v1188 = vsub.s32 0, %v1187
    %v1189 = vrot.slane %v1184, %v1188
    %v1190 = vlaneseq
    %v1191 = vshrl.u32 %v1190, 7
    %v1192 = vsub.s32 1, %v1191
    %v1193 = vrot.slane %v1184, %v1192
    %v1204 = vunpack.c.l.b16 %v1175
    %v1205 = vunpack.c.h.b16 %v1175
    %v1206 = vunpack.c.l.b16 %v1176
    %v1207 = vunpack.c.h.b16 %v1176
    %v1208 = vunpack.c.l.b16 %v1177
    %v1209 = vunpack.c.h.b16 %v1177
    %v1210 = vunpack.c.l.b16 %v1178
    %v1211 = vunpack.c.h.b16 %v1178
    %v1212 = vunpack.c.l.b16 %v1179
    %v1213 = vunpack.c.h.b16 %v1179
    %v1214 = vunpack.c.l.b16 %v1180
    %v1215 = vunpack.c.h.b16 %v1180
    %v1216 = vunpack.c.l.b16 %v1181
    %v1217 = vunpack.c.h.b16 %v1181
    %v1218 = vunpack.c.l.b16 %v1182
    %v1219 = vunpack.c.h.b16 %v1182
    %v1220 = vpack.c.b16 %v1206, %v1204
    %v1221 = vpack.c.b16 %v1207, %v1205
    %v1222 = vpack.c.b16 %v1210, %v1208
    %v1223 = vpack.c.b16 %v1211, %v1209
    %v1224 = vpack.c.b16 %v1214, %v1212
    %v1225 = vpack.c.b16 %v1215, %v1213
    %v1226 = vpack.c.b16 %v1218, %v1216
    %v1227 = vpack.c.b16 %v1219, %v1217
    %v1237 = vsel %vm184, %v1172, 0
    %v1240 = vsel %vm184, %v1173, 0
    %1242 = vmatprep.subr.bf16.mxu0 0
    %1243 = vmatpush1.bf16.msra.mxu0 0
    %1244 = vmatprep.subr.bf16.mxu0 0
    %1245 = vmatpush1.bf16.msra.mxu0 0
    %1246 = vmatprep.subr.bf16.mxu0 0
    %1247 = vmatpush1.bf16.msra.mxu0 0
    %1248 = vmatprep.subr.bf16.mxu0 0
    %1249 = vmatpush1.bf16.msra.mxu0 0
    %1250 = vmatprep.subr.bf16.mxu0 %v1227
    %1251 = vmatpush1.bf16.msra.mxu0 %v1226
    %1252 = vmatprep.subr.bf16.mxu0 %v1225
    %1253 = vmatpush1.bf16.msra.mxu0 %v1224
    %1254 = vmatprep.subr.bf16.mxu0 %v1223
    %1255 = vmatpush1.bf16.msra.mxu0 %v1222
    %1256 = vmatprep.subr.bf16.mxu0 %v1221
    %1257 = vmatpush1.bf16.msra.mxu0 %v1220
    %1258 = vmatprep.subr.bf16.mxu0 0
    %1259 = vmatpush2.bf16.msra.mxu0 0
    %1260 = vmatprep.subr.bf16.mxu0 0
    %1261 = vmatpush2.bf16.msra.mxu0 0
    %1262 = vmatprep.subr.bf16.mxu0 0
    %1263 = vmatpush2.bf16.msra.mxu0 0
    %1264 = vmatprep.subr.bf16.mxu0 0
    %1265 = vmatpush2.bf16.msra.mxu0 0
    %1266 = vmatprep.subr.bf16.mxu0 0
    %1267 = vmatpush2.bf16.msra.mxu0 0
    %1268 = vmatprep.subr.bf16.mxu0 0
    %1269 = vmatpush2.bf16.msra.mxu0 0
    %1270 = vmatprep.subr.bf16.mxu0 0
    %1271 = vmatpush2.bf16.msra.mxu0 0
    %1272 = vmatprep.subr.bf16.mxu0 0
    %1273 = vmatpush2.bf16.msra.mxu0 0
    %1274 = vmatprep.mubr.bf16.mxu0 0
    %1275 = vmatmul.mubr.bf16.gmra.mxu0 %v1237
    %v1276 = vpop.f32.mrf.mxu0
    %v1277 = vadd.f32 %v1189, %v1276
    %v1278 = vpop.f32.mrf.mxu0
    %v1279 = vadd.f32 %v1193, %v1278
    %v1280 = vpop.f32.mrf.mxu0
    %v1281 = vadd.f32 %v1189, %v1280
    %v1282 = vpop.f32.mrf.mxu0
    %v1283 = vadd.f32 %v1193, %v1282
    %1284 = vmatprep.mubr.bf16.mxu0 0
    %1285 = vmatmul.mubr.bf16.gmra.mxu0 %v1240
    %v1286 = vpop.f32.mrf.mxu0
    %v1287 = vadd.f32 %v1189, %v1286
    %v1288 = vpop.f32.mrf.mxu0
    %v1289 = vadd.f32 %v1193, %v1288
    %v1290 = vpop.f32.mrf.mxu0
    %v1291 = vadd.f32 %v1189, %v1290
    %v1292 = vpop.f32.mrf.mxu0
    %v1293 = vadd.f32 %v1193, %v1292
    %1294 = vdwg.mxu0
    %v1295 = vpack.c.bf16 %v1281, %v1277
    %v1296 = vpack.c.bf16 %v1283, %v1279
    %v1297 = vpack.c.bf16 %v1291, %v1287
    %v1298 = vpack.c.bf16 %v1293, %v1289
    %1301 = vrot.lane.b32.xlu0 %v1295, 64
    %v1302 = vpop.permute.xlu0 %1301
    %1303 = vrot.lane.b32.xlu0 %v1297, 64
    %v1304 = vpop.permute.xlu0 %1303
    %v1306 = vsel %vm355, %v1295, 0
    %v1309 = vsel %vm355, %v1297, 0
    %v1312 = vsel %vm355, %v1302, 0
    %v1315 = vsel %vm355, %v1304, 0
    %1317 = vmatprep.subr.bf16.mxu0 0
    %1318 = vmatpush1.bf16.xpose.msra.mxu0 0
    %1319 = vmatprep.subr.bf16.mxu0 0
    %1320 = vmatpush1.bf16.xpose.msra.mxu0 0
    %1321 = vmatprep.subr.bf16.mxu0 0
    %1322 = vmatpush1.bf16.xpose.msra.mxu0 0
    %1323 = vmatprep.subr.bf16.mxu0 0
    %1324 = vmatpush1.bf16.xpose.msra.mxu0 0
    %1325 = vmatprep.subr.bf16.mxu0 0
    %1326 = vmatpush1.bf16.xpose.msra.mxu0 0
    %1327 = vmatprep.subr.bf16.mxu0 0
    %1328 = vmatpush1.bf16.xpose.msra.mxu0 0
    %1329 = vmatprep.subr.bf16.mxu0 0
    %1330 = vmatpush1.bf16.xpose.msra.mxu0 %v1315
    %1331 = vmatprep.subr.bf16.mxu0 0
    %1332 = vmatpush1.bf16.xpose.msra.mxu0 %v1312
    %1333 = vmatprep.subr.bf16.mxu0 0
    %1334 = vmatpush2.bf16.xpose.msra.mxu0 0
    %1335 = vmatprep.subr.bf16.mxu0 0
    %1336 = vmatpush2.bf16.xpose.msra.mxu0 0
    %1337 = vmatprep.subr.bf16.mxu0 0
    %1338 = vmatpush2.bf16.xpose.msra.mxu0 0
    %1339 = vmatprep.subr.bf16.mxu0 0
    %1340 = vmatpush2.bf16.xpose.msra.mxu0 0
    %1341 = vmatprep.subr.bf16.mxu0 0
    %1342 = vmatpush2.bf16.xpose.msra.mxu0 0
    %1343 = vmatprep.subr.bf16.mxu0 0
    %1344 = vmatpush2.bf16.xpose.msra.mxu0 0
    %1345 = vmatprep.subr.bf16.mxu0 0
    %1346 = vmatpush2.bf16.xpose.msra.mxu0 0
    %1347 = vmatprep.subr.bf16.mxu0 0
    %1348 = vmatpush2.bf16.xpose.msra.mxu0 0
    %1349 = vmatprep.mubr.bf16.mxu0 0
    %1350 = vmatmul.mubr.bf16.gmra.mxu0 %v1306
    %v1351 = vpop.f32.mrf.mxu0
    %v1352 = vadd.f32 0.0, %v1351
    %v1353 = vpop.f32.mrf.mxu0
    %v1354 = vpop.f32.mrf.mxu0
    %v1355 = vadd.f32 0.0, %v1354
    %v1356 = vpop.f32.mrf.mxu0
    %1357 = vmatprep.mubr.bf16.mxu0 0
    %1358 = vmatmul.mubr.bf16.gmra.mxu0 %v1309
    %v1359 = vpop.f32.mrf.mxu0
    %v1360 = vadd.f32 0.0, %v1359
    %v1361 = vpop.f32.mrf.mxu0
    %v1362 = vpop.f32.mrf.mxu0
    %v1363 = vadd.f32 0.0, %v1362
    %v1364 = vpop.f32.mrf.mxu0
    %1365 = vdwg.mxu0
    %v1366 = vmul.f32 %v1352, 0.17677669
    %v1367 = vmul.f32 %v1355, 0.17677669
    %v1368 = vmul.f32 %v1360, 0.17677669
    %v1369 = vmul.f32 %v1363, 0.17677669
    %v1370 = vadd.f32 %v1366, %v175
    %v1371 = vadd.f32 %v1367, %v176
    %v1372 = vadd.f32 %v1368, %v177
    %v1373 = vadd.f32 %v1369, %v178
    %v1374 = vsel %vm355, %v1370, -inf
    %1375 = vmax.xlane.f32.xlu0 %v1374
    %v1376 = vpop.xlane.xlu0 %1375
    %v1377 = vsel %vm355, %v1371, -inf
    %1378 = vmax.xlane.f32.xlu0 %v1377
    %v1379 = vpop.xlane.xlu0 %1378
    %v1380 = vsel %vm355, %v1372, -inf
    %1381 = vmax.xlane.f32.xlu0 %v1380
    %v1382 = vpop.xlane.xlu0 %1381
    %v1383 = vsel %vm355, %v1373, -inf
    %1384 = vmax.xlane.f32.xlu0 %v1383
    %v1385 = vpop.xlane.xlu0 %1384
    %v1386 = vsub.f32 %v1370, %v1376
    %v1387 = vsub.f32 %v1371, %v1379
    %v1388 = vsub.f32 %v1372, %v1382
    %v1389 = vsub.f32 %v1373, %v1385
    %v1390 = vmul.f32 %v1386, 1.442695
    %v1391 = vpow.pop %v1390
    %v1392 = vmul.f32 %v1387, 1.442695
    %v1393 = vpow.pop %v1392
    %v1394 = vmul.f32 %v1388, 1.442695
    %v1395 = vpow.pop %v1394
    %v1396 = vmul.f32 %v1389, 1.442695
    %v1397 = vpow.pop %v1396
    %v1398 = vsel %vm355, %v1391, 0.0
    %1399 = vadd.xlane.f32.xlu0 %v1398
    %v1400 = vpop.xlane.xlu0 %1399
    %v1401 = vsel %vm355, %v1393, 0.0
    %1402 = vadd.xlane.f32.xlu0 %v1401
    %v1403 = vpop.xlane.xlu0 %1402
    %v1404 = vsel %vm355, %v1395, 0.0
    %1405 = vadd.xlane.f32.xlu0 %v1404
    %v1406 = vpop.xlane.xlu0 %1405
    %v1407 = vsel %vm355, %v1397, 0.0
    %1408 = vadd.xlane.f32.xlu0 %v1407
    %v1409 = vpop.xlane.xlu0 %1408
    %v1410 = vrcp.pop %v1400
    %v1411 = vrcp.pop %v1403
    %v1412 = vrcp.pop %v1406
    %v1413 = vrcp.pop %v1409
    %v1414 = vmul.f32 %v1391, %v1410
    %v1415 = vmul.f32 %v1393, %v1411
    %v1416 = vmul.f32 %v1395, %v1412
    %v1417 = vmul.f32 %v1397, %v1413
    %v1418 = vpack.c.bf16 %v1415, %v1414
    %v1419 = vpack.c.bf16 %v1417, %v1416
    %v1421 = vsel %vm355, %v1418, 0
    %v1424 = vsel %vm355, %v1419, 0
    %1426 = vmatprep.subr.bf16.mxu0 0
    %1427 = vmatpush1.bf16.msra.mxu0 0
    %1428 = vmatprep.subr.bf16.mxu0 0
    %1429 = vmatpush1.bf16.msra.mxu0 0
    %1430 = vmatprep.subr.bf16.mxu0 0
    %1431 = vmatpush1.bf16.msra.mxu0 0
    %1432 = vmatprep.subr.bf16.mxu0 0
    %1433 = vmatpush1.bf16.msra.mxu0 0
    %1434 = vmatprep.subr.bf16.mxu0 0
    %1435 = vmatpush1.bf16.msra.mxu0 0
    %1436 = vmatprep.subr.bf16.mxu0 0
    %1437 = vmatpush1.bf16.msra.mxu0 0
    %1438 = vmatprep.subr.bf16.mxu0 0
    %1439 = vmatpush1.bf16.msra.mxu0 %v1298
    %1440 = vmatprep.subr.bf16.mxu0 0
    %1441 = vmatpush1.bf16.msra.mxu0 %v1296
    %1442 = vmatprep.subr.bf16.mxu0 0
    %1443 = vmatpush2.bf16.msra.mxu0 0
    %1444 = vmatprep.subr.bf16.mxu0 0
    %1445 = vmatpush2.bf16.msra.mxu0 0
    %1446 = vmatprep.subr.bf16.mxu0 0
    %1447 = vmatpush2.bf16.msra.mxu0 0
    %1448 = vmatprep.subr.bf16.mxu0 0
    %1449 = vmatpush2.bf16.msra.mxu0 0
    %1450 = vmatprep.subr.bf16.mxu0 0
    %1451 = vmatpush2.bf16.msra.mxu0 0
    %1452 = vmatprep.subr.bf16.mxu0 0
    %1453 = vmatpush2.bf16.msra.mxu0 0
    %1454 = vmatprep.subr.bf16.mxu0 0
    %1455 = vmatpush2.bf16.msra.mxu0 0
    %1456 = vmatprep.subr.bf16.mxu0 0
    %1457 = vmatpush2.bf16.msra.mxu0 0
    %1458 = vmatprep.mubr.bf16.mxu0 0
    %1459 = vmatmul.mubr.bf16.gmra.mxu0 %v1421
    %v1460 = vpop.f32.mrf.mxu0
    %v1461 = vadd.f32 0.0, %v1460
    %v1462 = vpop.f32.mrf.mxu0
    %v1463 = vpop.f32.mrf.mxu0
    %v1464 = vadd.f32 0.0, %v1463
    %v1465 = vpop.f32.mrf.mxu0
    %1466 = vmatprep.mubr.bf16.mxu0 0
    %1467 = vmatmul.mubr.bf16.gmra.mxu0 %v1424
    %v1468 = vpop.f32.mrf.mxu0
    %v1469 = vadd.f32 0.0, %v1468
    %v1470 = vpop.f32.mrf.mxu0
    %v1471 = vpop.f32.mrf.mxu0
    %v1472 = vadd.f32 0.0, %v1471
    %v1473 = vpop.f32.mrf.mxu0
    %1474 = vdwg.mxu0
    %1475 = vrot.lane.b32.xlu0 %v1295, 96
    %v1476 = vpop.permute.xlu0 %1475
    %1477 = vrot.lane.b32.xlu0 %v1297, 96
    %v1478 = vpop.permute.xlu0 %1477
    %1479 = vrot.lane.b32.xlu0 %v1295, 32
    %v1480 = vpop.permute.xlu0 %1479
    %1481 = vrot.lane.b32.xlu0 %v1297, 32
    %v1482 = vpop.permute.xlu0 %1481
    %v1484 = vsel %vm355, %v1476, 0
    %v1487 = vsel %vm355, %v1478, 0
    %v1490 = vsel %vm355, %v1480, 0
    %v1493 = vsel %vm355, %v1482, 0
    %1495 = vmatprep.subr.bf16.mxu0 0
    %1496 = vmatpush1.bf16.xpose.msra.mxu0 0
    %1497 = vmatprep.subr.bf16.mxu0 0
    %1498 = vmatpush1.bf16.xpose.msra.mxu0 0
    %1499 = vmatprep.subr.bf16.mxu0 0
    %1500 = vmatpush1.bf16.xpose.msra.mxu0 0
    %1501 = vmatprep.subr.bf16.mxu0 0
    %1502 = vmatpush1.bf16.xpose.msra.mxu0 0
    %1503 = vmatprep.subr.bf16.mxu0 0
    %1504 = vmatpush1.bf16.xpose.msra.mxu0 0
    %1505 = vmatprep.subr.bf16.mxu0 0
    %1506 = vmatpush1.bf16.xpose.msra.mxu0 0
    %1507 = vmatprep.subr.bf16.mxu0 0
    %1508 = vmatpush1.bf16.xpose.msra.mxu0 %v1493
    %1509 = vmatprep.subr.bf16.mxu0 0
    %1510 = vmatpush1.bf16.xpose.msra.mxu0 %v1490
    %1511 = vmatprep.subr.bf16.mxu0 0
    %1512 = vmatpush2.bf16.xpose.msra.mxu0 0
    %1513 = vmatprep.subr.bf16.mxu0 0
    %1514 = vmatpush2.bf16.xpose.msra.mxu0 0
    %1515 = vmatprep.subr.bf16.mxu0 0
    %1516 = vmatpush2.bf16.xpose.msra.mxu0 0
    %1517 = vmatprep.subr.bf16.mxu0 0
    %1518 = vmatpush2.bf16.xpose.msra.mxu0 0
    %1519 = vmatprep.subr.bf16.mxu0 0
    %1520 = vmatpush2.bf16.xpose.msra.mxu0 0
    %1521 = vmatprep.subr.bf16.mxu0 0
    %1522 = vmatpush2.bf16.xpose.msra.mxu0 0
    %1523 = vmatprep.subr.bf16.mxu0 0
    %1524 = vmatpush2.bf16.xpose.msra.mxu0 0
    %1525 = vmatprep.subr.bf16.mxu0 0
    %1526 = vmatpush2.bf16.xpose.msra.mxu0 0
    %1527 = vmatprep.mubr.bf16.mxu0 0
    %1528 = vmatmul.mubr.bf16.gmra.mxu0 %v1484
    %v1529 = vpop.f32.mrf.mxu0
    %v1530 = vadd.f32 0.0, %v1529
    %v1531 = vpop.f32.mrf.mxu0
    %v1532 = vpop.f32.mrf.mxu0
    %v1533 = vadd.f32 0.0, %v1532
    %v1534 = vpop.f32.mrf.mxu0
    %1535 = vmatprep.mubr.bf16.mxu0 0
    %1536 = vmatmul.mubr.bf16.gmra.mxu0 %v1487
    %v1537 = vpop.f32.mrf.mxu0
    %v1538 = vadd.f32 0.0, %v1537
    %v1539 = vpop.f32.mrf.mxu0
    %v1540 = vpop.f32.mrf.mxu0
    %v1541 = vadd.f32 0.0, %v1540
    %v1542 = vpop.f32.mrf.mxu0
    %1543 = vdwg.mxu0
    %v1544 = vmul.f32 %v1530, 0.17677669
    %v1545 = vmul.f32 %v1533, 0.17677669
    %v1546 = vmul.f32 %v1538, 0.17677669
    %v1547 = vmul.f32 %v1541, 0.17677669
    %v1548 = vadd.f32 %v1544, %v175
    %v1549 = vadd.f32 %v1545, %v176
    %v1550 = vadd.f32 %v1546, %v177
    %v1551 = vadd.f32 %v1547, %v178
    %v1552 = vsel %vm355, %v1548, -inf
    %1553 = vmax.xlane.f32.xlu0 %v1552
    %v1554 = vpop.xlane.xlu0 %1553
    %v1555 = vsel %vm355, %v1549, -inf
    %1556 = vmax.xlane.f32.xlu0 %v1555
    %v1557 = vpop.xlane.xlu0 %1556
    %v1558 = vsel %vm355, %v1550, -inf
    %1559 = vmax.xlane.f32.xlu0 %v1558
    %v1560 = vpop.xlane.xlu0 %1559
    %v1561 = vsel %vm355, %v1551, -inf
    %1562 = vmax.xlane.f32.xlu0 %v1561
    %v1563 = vpop.xlane.xlu0 %1562
    %v1564 = vsub.f32 %v1548, %v1554
    %v1565 = vsub.f32 %v1549, %v1557
    %v1566 = vsub.f32 %v1550, %v1560
    %v1567 = vsub.f32 %v1551, %v1563
    %v1568 = vmul.f32 %v1564, 1.442695
    %v1569 = vpow.pop %v1568
    %v1570 = vmul.f32 %v1565, 1.442695
    %v1571 = vpow.pop %v1570
    %v1572 = vmul.f32 %v1566, 1.442695
    %v1573 = vpow.pop %v1572
    %v1574 = vmul.f32 %v1567, 1.442695
    %v1575 = vpow.pop %v1574
    %v1576 = vsel %vm355, %v1569, 0.0
    %1577 = vadd.xlane.f32.xlu0 %v1576
    %v1578 = vpop.xlane.xlu0 %1577
    %v1579 = vsel %vm355, %v1571, 0.0
    %1580 = vadd.xlane.f32.xlu0 %v1579
    %v1581 = vpop.xlane.xlu0 %1580
    %v1582 = vsel %vm355, %v1573, 0.0
    %1583 = vadd.xlane.f32.xlu0 %v1582
    %v1584 = vpop.xlane.xlu0 %1583
    %v1585 = vsel %vm355, %v1575, 0.0
    %1586 = vadd.xlane.f32.xlu0 %v1585
    %v1587 = vpop.xlane.xlu0 %1586
    %v1588 = vrcp.pop %v1578
    %v1589 = vrcp.pop %v1581
    %v1590 = vrcp.pop %v1584
    %v1591 = vrcp.pop %v1587
    %v1592 = vmul.f32 %v1569, %v1588
    %v1593 = vmul.f32 %v1571, %v1589
    %v1594 = vmul.f32 %v1573, %v1590
    %v1595 = vmul.f32 %v1575, %v1591
    %v1596 = vpack.c.bf16 %v1593, %v1592
    %v1597 = vpack.c.bf16 %v1595, %v1594
    %1600 = vrot.lane.b32.xlu0 %v1296, 96
    %v1601 = vpop.permute.xlu0 %1600
    %1602 = vrot.lane.b32.xlu0 %v1298, 96
    %v1603 = vpop.permute.xlu0 %1602
    %v1607 = vsel %vm355, %v1596, 0
    %v1610 = vsel %vm355, %v1597, 0
    %1612 = vmatprep.subr.bf16.mxu0 0
    %1613 = vmatpush1.bf16.msra.mxu0 0
    %1614 = vmatprep.subr.bf16.mxu0 0
    %1615 = vmatpush1.bf16.msra.mxu0 0
    %1616 = vmatprep.subr.bf16.mxu0 0
    %1617 = vmatpush1.bf16.msra.mxu0 0
    %1618 = vmatprep.subr.bf16.mxu0 0
    %1619 = vmatpush1.bf16.msra.mxu0 0
    %1620 = vmatprep.subr.bf16.mxu0 0
    %1621 = vmatpush1.bf16.msra.mxu0 0
    %1622 = vmatprep.subr.bf16.mxu0 0
    %1623 = vmatpush1.bf16.msra.mxu0 0
    %1624 = vmatprep.subr.bf16.mxu0 0
    %1625 = vmatpush1.bf16.msra.mxu0 %v1603
    %1626 = vmatprep.subr.bf16.mxu0 0
    %1627 = vmatpush1.bf16.msra.mxu0 %v1601
    %1628 = vmatprep.subr.bf16.mxu0 0
    %1629 = vmatpush2.bf16.msra.mxu0 0
    %1630 = vmatprep.subr.bf16.mxu0 0
    %1631 = vmatpush2.bf16.msra.mxu0 0
    %1632 = vmatprep.subr.bf16.mxu0 0
    %1633 = vmatpush2.bf16.msra.mxu0 0
    %1634 = vmatprep.subr.bf16.mxu0 0
    %1635 = vmatpush2.bf16.msra.mxu0 0
    %1636 = vmatprep.subr.bf16.mxu0 0
    %1637 = vmatpush2.bf16.msra.mxu0 0
    %1638 = vmatprep.subr.bf16.mxu0 0
    %1639 = vmatpush2.bf16.msra.mxu0 0
    %1640 = vmatprep.subr.bf16.mxu0 0
    %1641 = vmatpush2.bf16.msra.mxu0 0
    %1642 = vmatprep.subr.bf16.mxu0 0
    %1643 = vmatpush2.bf16.msra.mxu0 0
    %1644 = vmatprep.mubr.bf16.mxu0 0
    %1645 = vmatmul.mubr.bf16.gmra.mxu0 %v1607
    %v1646 = vpop.f32.mrf.mxu0
    %v1647 = vadd.f32 0.0, %v1646
    %v1648 = vpop.f32.mrf.mxu0
    %v1649 = vpop.f32.mrf.mxu0
    %v1650 = vadd.f32 0.0, %v1649
    %v1651 = vpop.f32.mrf.mxu0
    %1652 = vmatprep.mubr.bf16.mxu0 0
    %1653 = vmatmul.mubr.bf16.gmra.mxu0 %v1610
    %v1654 = vpop.f32.mrf.mxu0
    %v1655 = vadd.f32 0.0, %v1654
    %v1656 = vpop.f32.mrf.mxu0
    %v1657 = vpop.f32.mrf.mxu0
    %v1658 = vadd.f32 0.0, %v1657
    %v1659 = vpop.f32.mrf.mxu0
    %1660 = vdwg.mxu0
    %1665 = vrot.lane.b32.xlu0 %v1647, 32
    %v1666 = vpop.permute.xlu0 %1665
    %1667 = vrot.lane.b32.xlu0 %v1650, 32
    %v1668 = vpop.permute.xlu0 %1667
    %1669 = vrot.lane.b32.xlu0 %v1655, 32
    %v1670 = vpop.permute.xlu0 %1669
    %1671 = vrot.lane.b32.xlu0 %v1658, 32
    %v1672 = vpop.permute.xlu0 %1671
    %v1677 = vsel %vm355, %v1461, %v1666
    %v1678 = vsel %vm355, %v1464, %v1668
    %v1679 = vsel %vm355, %v1469, %v1670
    %v1680 = vsel %vm355, %v1472, %v1672
    %v1681 = vpack.c.bf16 %v1678, %v1677
    %v1682 = vpack.c.bf16 %v1680, %v1679
    %s1683 = scalar_lea.vmem %s8, 32
    %v1684 = vld [vmem:[%s1683] sm:$0xf]
    %v1685 = vld [vmem:[%s1683 + $0x4] sm:$0xf]
    %v1686 = vld [vmem:[%s1683 + $0x8] sm:$0xf]
    %v1687 = vld [vmem:[%s1683 + $0xc] sm:$0xf]
    %v1688 = vld [vmem:[%s1683 + $0x10] sm:$0xf]
    %v1689 = vld [vmem:[%s1683 + $0x14] sm:$0xf]
    %v1690 = vld [vmem:[%s1683 + $0x18] sm:$0xf]
    %v1691 = vld [vmem:[%s1683 + $0x1c] sm:$0xf]
    %v1700 = vunpack.c.l.b16 %v1684
    %v1701 = vunpack.c.l.b16 %v1685
    %v1702 = vunpack.c.l.b16 %v1686
    %v1703 = vunpack.c.l.b16 %v1687
    %v1704 = vunpack.c.l.b16 %v1688
    %v1705 = vunpack.c.l.b16 %v1689
    %v1706 = vunpack.c.l.b16 %v1690
    %v1707 = vunpack.c.l.b16 %v1691
    %v1708 = vpack.c.b16 %v1701, %v1700
    %v1709 = vpack.c.b16 %v1703, %v1702
    %v1710 = vpack.c.b16 %v1705, %v1704
    %v1711 = vpack.c.b16 %v1707, %v1706
    %v1717 = vsel %vm184, %v1681, 0
    %v1720 = vsel %vm184, %v1682, 0
    %1722 = vmatprep.subr.bf16.mxu0 0
    %1723 = vmatpush1.bf16.msra.mxu0 0
    %1724 = vmatprep.subr.bf16.mxu0 0
    %1725 = vmatpush1.bf16.msra.mxu0 0
    %1726 = vmatprep.subr.bf16.mxu0 0
    %1727 = vmatpush1.bf16.msra.mxu0 0
    %1728 = vmatprep.subr.bf16.mxu0 0
    %1729 = vmatpush1.bf16.msra.mxu0 0
    %1730 = vmatprep.subr.bf16.mxu0 0
    %1731 = vmatpush1.bf16.msra.mxu0 %v1711
    %1732 = vmatprep.subr.bf16.mxu0 0
    %1733 = vmatpush1.bf16.msra.mxu0 %v1710
    %1734 = vmatprep.subr.bf16.mxu0 0
    %1735 = vmatpush1.bf16.msra.mxu0 %v1709
    %1736 = vmatprep.subr.bf16.mxu0 0
    %1737 = vmatpush1.bf16.msra.mxu0 %v1708
    %1738 = vmatprep.subr.bf16.mxu0 0
    %1739 = vmatpush2.bf16.msra.mxu0 0
    %1740 = vmatprep.subr.bf16.mxu0 0
    %1741 = vmatpush2.bf16.msra.mxu0 0
    %1742 = vmatprep.subr.bf16.mxu0 0
    %1743 = vmatpush2.bf16.msra.mxu0 0
    %1744 = vmatprep.subr.bf16.mxu0 0
    %1745 = vmatpush2.bf16.msra.mxu0 0
    %1746 = vmatprep.subr.bf16.mxu0 0
    %1747 = vmatpush2.bf16.msra.mxu0 0
    %1748 = vmatprep.subr.bf16.mxu0 0
    %1749 = vmatpush2.bf16.msra.mxu0 0
    %1750 = vmatprep.subr.bf16.mxu0 0
    %1751 = vmatpush2.bf16.msra.mxu0 0
    %1752 = vmatprep.subr.bf16.mxu0 0
    %1753 = vmatpush2.bf16.msra.mxu0 0
    %1754 = vmatprep.mubr.bf16.mxu0 0
    %1755 = vmatmul.mubr.bf16.gmra.mxu0 %v1717
    %v1756 = vpop.f32.mrf.mxu0
    %v1757 = vadd.f32 0.0, %v1756
    %v1758 = vpop.f32.mrf.mxu0
    %v1759 = vpop.f32.mrf.mxu0
    %v1760 = vadd.f32 0.0, %v1759
    %v1761 = vpop.f32.mrf.mxu0
    %1762 = vmatprep.mubr.bf16.mxu0 0
    %1763 = vmatmul.mubr.bf16.gmra.mxu0 %v1720
    %v1764 = vpop.f32.mrf.mxu0
    %v1765 = vadd.f32 0.0, %v1764
    %v1766 = vpop.f32.mrf.mxu0
    %v1767 = vpop.f32.mrf.mxu0
    %v1768 = vadd.f32 0.0, %v1767
    %v1769 = vpop.f32.mrf.mxu0
    %1770 = vdwg.mxu0
    %v1771 = vadd.f32 %v1124, %v1757
    %v1772 = vadd.f32 %v1125, %v1760
    %v1773 = vadd.f32 %v1126, %v1765
    %v1774 = vadd.f32 %v1127, %v1768
    %s1775 = scalar_lea.vmem %s9, 1
    %v1776 = vld [vmem:[%s1775] sm:$0x1]
    %v1777 = vmul.f32 %v1771, %v1771
    %v1778 = vmul.f32 %v1772, %v1772
    %v1779 = vmul.f32 %v1773, %v1773
    %v1780 = vmul.f32 %v1774, %v1774
    %v1781 = vsel %vm184, %v1777, 0.0
    %1782 = vadd.xlane.f32.xlu0 %v1781
    %v1783 = vpop.xlane.xlu0 %1782
    %v1784 = vsel %vm184, %v1778, 0.0
    %1785 = vadd.xlane.f32.xlu0 %v1784
    %v1786 = vpop.xlane.xlu0 %1785
    %v1787 = vsel %vm184, %v1779, 0.0
    %1788 = vadd.xlane.f32.xlu0 %v1787
    %v1789 = vpop.xlane.xlu0 %1788
    %v1790 = vsel %vm184, %v1780, 0.0
    %1791 = vadd.xlane.f32.xlu0 %v1790
    %v1792 = vpop.xlane.xlu0 %1791
    %v1793 = vmul.f32 %v1783, %v197
    %v1794 = vmul.f32 %v1786, %v197
    %v1795 = vmul.f32 %v1789, %v197
    %v1796 = vmul.f32 %v1792, %v197
    %v1797 = vadd.f32 %v1793, 1e-06
    %v1798 = vadd.f32 %v1794, 1e-06
    %v1799 = vadd.f32 %v1795, 1e-06
    %v1800 = vadd.f32 %v1796, 1e-06
    %v1801 = vrsqrt.pop %v1797
    %v1802 = vrsqrt.pop %v1798
    %v1803 = vrsqrt.pop %v1799
    %v1804 = vrsqrt.pop %v1800
    %v1805 = vmul.f32 %v1771, %v1801
    %v1806 = vmul.f32 %v1772, %v1802
    %v1807 = vmul.f32 %v1773, %v1803
    %v1808 = vmul.f32 %v1774, %v1804
    %v1810 = vlaneseq
    %v1811 = vshrl.u32 %v1810, 7
    %v1812 = vsub.s32 0, %v1811
    %v1813 = vrot.slane %v1776, %v1812
    %v1815 = vmul.f32 %v1805, %v1813
    %v1816 = vmul.f32 %v1806, %v1813
    %v1817 = vmul.f32 %v1807, %v1813
    %v1818 = vmul.f32 %v1808, %v1813
    %v1819 = vpack.c.bf16 %v1816, %v1815
    %v1820 = vpack.c.bf16 %v1818, %v1817
    %s1821 = scalar_lea.vmem %s10, 64
    %v1822 = vld [vmem:[%s1821] sm:$0xff]
    %v1823 = vld [vmem:[%s1821 + $0x8] sm:$0xff]
    %v1824 = vld [vmem:[%s1821 + $0x10] sm:$0xff]
    %v1825 = vld [vmem:[%s1821 + $0x18] sm:$0xff]
    %v1826 = vld [vmem:[%s1821 + $0x20] sm:$0xff]
    %v1827 = vld [vmem:[%s1821 + $0x28] sm:$0xff]
    %v1828 = vld [vmem:[%s1821 + $0x30] sm:$0xff]
    %v1829 = vld [vmem:[%s1821 + $0x38] sm:$0xff]
    %v1838 = vunpack.c.l.b16 %v1822
    %v1839 = vunpack.c.h.b16 %v1822
    %v1840 = vunpack.c.l.b16 %v1823
    %v1841 = vunpack.c.h.b16 %v1823
    %v1842 = vunpack.c.l.b16 %v1824
    %v1843 = vunpack.c.h.b16 %v1824
    %v1844 = vunpack.c.l.b16 %v1825
    %v1845 = vunpack.c.h.b16 %v1825
    %v1846 = vunpack.c.l.b16 %v1826
    %v1847 = vunpack.c.h.b16 %v1826
    %v1848 = vunpack.c.l.b16 %v1827
    %v1849 = vunpack.c.h.b16 %v1827
    %v1850 = vunpack.c.l.b16 %v1828
    %v1851 = vunpack.c.h.b16 %v1828
    %v1852 = vunpack.c.l.b16 %v1829
    %v1853 = vunpack.c.h.b16 %v1829
    %v1854 = vpack.c.b16 %v1840, %v1838
    %v1855 = vpack.c.b16 %v1841, %v1839
    %v1856 = vpack.c.b16 %v1844, %v1842
    %v1857 = vpack.c.b16 %v1845, %v1843
    %v1858 = vpack.c.b16 %v1848, %v1846
    %v1859 = vpack.c.b16 %v1849, %v1847
    %v1860 = vpack.c.b16 %v1852, %v1850
    %v1861 = vpack.c.b16 %v1853, %v1851
    %v1871 = vsel %vm184, %v1819, 0
    %v1874 = vsel %vm184, %v1820, 0
    %1876 = vmatprep.subr.bf16.mxu0 0
    %1877 = vmatpush1.bf16.msra.mxu0 0
    %1878 = vmatprep.subr.bf16.mxu0 0
    %1879 = vmatpush1.bf16.msra.mxu0 0
    %1880 = vmatprep.subr.bf16.mxu0 0
    %1881 = vmatpush1.bf16.msra.mxu0 0
    %1882 = vmatprep.subr.bf16.mxu0 0
    %1883 = vmatpush1.bf16.msra.mxu0 0
    %1884 = vmatprep.subr.bf16.mxu0 %v1861
    %1885 = vmatpush1.bf16.msra.mxu0 %v1860
    %1886 = vmatprep.subr.bf16.mxu0 %v1859
    %1887 = vmatpush1.bf16.msra.mxu0 %v1858
    %1888 = vmatprep.subr.bf16.mxu0 %v1857
    %1889 = vmatpush1.bf16.msra.mxu0 %v1856
    %1890 = vmatprep.subr.bf16.mxu0 %v1855
    %1891 = vmatpush1.bf16.msra.mxu0 %v1854
    %1892 = vmatprep.subr.bf16.mxu0 0
    %1893 = vmatpush2.bf16.msra.mxu0 0
    %1894 = vmatprep.subr.bf16.mxu0 0
    %1895 = vmatpush2.bf16.msra.mxu0 0
    %1896 = vmatprep.subr.bf16.mxu0 0
    %1897 = vmatpush2.bf16.msra.mxu0 0
    %1898 = vmatprep.subr.bf16.mxu0 0
    %1899 = vmatpush2.bf16.msra.mxu0 0
    %1900 = vmatprep.subr.bf16.mxu0 0
    %1901 = vmatpush2.bf16.msra.mxu0 0
    %1902 = vmatprep.subr.bf16.mxu0 0
    %1903 = vmatpush2.bf16.msra.mxu0 0
    %1904 = vmatprep.subr.bf16.mxu0 0
    %1905 = vmatpush2.bf16.msra.mxu0 0
    %1906 = vmatprep.subr.bf16.mxu0 0
    %1907 = vmatpush2.bf16.msra.mxu0 0
    %1908 = vmatprep.mubr.bf16.mxu0 0
    %1909 = vmatmul.mubr.bf16.gmra.mxu0 %v1871
    %v1910 = vpop.f32.mrf.mxu0
    %v1911 = vadd.f32 0.0, %v1910
    %v1912 = vpop.f32.mrf.mxu0
    %v1913 = vadd.f32 0.0, %v1912
    %v1914 = vpop.f32.mrf.mxu0
    %v1915 = vadd.f32 0.0, %v1914
    %v1916 = vpop.f32.mrf.mxu0
    %v1917 = vadd.f32 0.0, %v1916
    %1918 = vmatprep.mubr.bf16.mxu0 0
    %1919 = vmatmul.mubr.bf16.gmra.mxu0 %v1874
    %v1920 = vpop.f32.mrf.mxu0
    %v1921 = vadd.f32 0.0, %v1920
    %v1922 = vpop.f32.mrf.mxu0
    %v1923 = vadd.f32 0.0, %v1922
    %v1924 = vpop.f32.mrf.mxu0
    %v1925 = vadd.f32 0.0, %v1924
    %v1926 = vpop.f32.mrf.mxu0
    %v1927 = vadd.f32 0.0, %v1926
    %1928 = vdwg.mxu0
    %v1929 = vxor.u32 %v1911, 2147483648
    %v1930 = vxor.u32 %v1915, 2147483648
    %v1931 = vxor.u32 %v1921, 2147483648
    %v1932 = vxor.u32 %v1925, 2147483648
    %v1933 = vmul.f32 %v1929, 1.442695
    %v1934 = vpow.pop %v1933
    %v1935 = vmul.f32 %v1930, 1.442695
    %v1936 = vpow.pop %v1935
    %v1937 = vmul.f32 %v1931, 1.442695
    %v1938 = vpow.pop %v1937
    %v1939 = vmul.f32 %v1932, 1.442695
    %v1940 = vpow.pop %v1939
    %v1941 = vadd.f32 %v1934, 1.0
    %v1942 = vadd.f32 %v1936, 1.0
    %v1943 = vadd.f32 %v1938, 1.0
    %v1944 = vadd.f32 %v1940, 1.0
    %v1945 = vrcp.pop %v1941
    %v1946 = vmul.f32 1.0, %v1945
    %v1947 = vrcp.pop %v1942
    %v1948 = vmul.f32 1.0, %v1947
    %v1949 = vrcp.pop %v1943
    %v1950 = vmul.f32 1.0, %v1949
    %v1951 = vrcp.pop %v1944
    %v1952 = vmul.f32 1.0, %v1951
    %v1953 = vmul.f32 %v1911, %v1946
    %v1954 = vmul.f32 %v1915, %v1948
    %v1955 = vmul.f32 %v1921, %v1950
    %v1956 = vmul.f32 %v1925, %v1952
    %v1957 = vmul.f32 %v1953, %v1913
    %v1958 = vmul.f32 %v1954, %v1917
    %v1959 = vmul.f32 %v1955, %v1923
    %v1960 = vmul.f32 %v1956, %v1927
    %v1961 = vpack.c.bf16 %v1958, %v1957
    %v1962 = vpack.c.bf16 %v1960, %v1959
    %s1963 = scalar_lea.vmem %s11, 64
    %v1964 = vld [vmem:[%s1963] sm:$0xf]
    %v1965 = vld [vmem:[%s1963 + $0x4] sm:$0xf]
    %v1966 = vld [vmem:[%s1963 + $0x8] sm:$0xf]
    %v1967 = vld [vmem:[%s1963 + $0xc] sm:$0xf]
    %v1968 = vld [vmem:[%s1963 + $0x10] sm:$0xf]
    %v1969 = vld [vmem:[%s1963 + $0x14] sm:$0xf]
    %v1970 = vld [vmem:[%s1963 + $0x18] sm:$0xf]
    %v1971 = vld [vmem:[%s1963 + $0x1c] sm:$0xf]
    %v1972 = vld [vmem:[%s1963 + $0x20] sm:$0xf]
    %v1973 = vld [vmem:[%s1963 + $0x24] sm:$0xf]
    %v1974 = vld [vmem:[%s1963 + $0x28] sm:$0xf]
    %v1975 = vld [vmem:[%s1963 + $0x2c] sm:$0xf]
    %v1976 = vld [vmem:[%s1963 + $0x30] sm:$0xf]
    %v1977 = vld [vmem:[%s1963 + $0x34] sm:$0xf]
    %v1978 = vld [vmem:[%s1963 + $0x38] sm:$0xf]
    %v1979 = vld [vmem:[%s1963 + $0x3c] sm:$0xf]
    %v1996 = vunpack.c.l.b16 %v1964
    %v1997 = vunpack.c.l.b16 %v1965
    %v1998 = vunpack.c.l.b16 %v1966
    %v1999 = vunpack.c.l.b16 %v1967
    %v2000 = vunpack.c.l.b16 %v1968
    %v2001 = vunpack.c.l.b16 %v1969
    %v2002 = vunpack.c.l.b16 %v1970
    %v2003 = vunpack.c.l.b16 %v1971
    %v2004 = vunpack.c.l.b16 %v1972
    %v2005 = vunpack.c.l.b16 %v1973
    %v2006 = vunpack.c.l.b16 %v1974
    %v2007 = vunpack.c.l.b16 %v1975
    %v2008 = vunpack.c.l.b16 %v1976
    %v2009 = vunpack.c.l.b16 %v1977
    %v2010 = vunpack.c.l.b16 %v1978
    %v2011 = vunpack.c.l.b16 %v1979
    %v2012 = vpack.c.b16 %v1997, %v1996
    %v2013 = vpack.c.b16 %v1999, %v1998
    %v2014 = vpack.c.b16 %v2001, %v2000
    %v2015 = vpack.c.b16 %v2003, %v2002
    %v2016 = vpack.c.b16 %v2005, %v2004
    %v2017 = vpack.c.b16 %v2007, %v2006
    %v2018 = vpack.c.b16 %v2009, %v2008
    %v2019 = vpack.c.b16 %v2011, %v2010
    %2028 = vmatprep.subr.bf16.mxu0 0
    %2029 = vmatpush1.bf16.msra.mxu0 %v2019
    %2030 = vmatprep.subr.bf16.mxu0 0
    %2031 = vmatpush1.bf16.msra.mxu0 %v2018
    %2032 = vmatprep.subr.bf16.mxu0 0
    %2033 = vmatpush1.bf16.msra.mxu0 %v2017
    %2034 = vmatprep.subr.bf16.mxu0 0
    %2035 = vmatpush1.bf16.msra.mxu0 %v2016
    %2036 = vmatprep.subr.bf16.mxu0 0
    %2037 = vmatpush1.bf16.msra.mxu0 %v2015
    %2038 = vmatprep.subr.bf16.mxu0 0
    %2039 = vmatpush1.bf16.msra.mxu0 %v2014
    %2040 = vmatprep.subr.bf16.mxu0 0
    %2041 = vmatpush1.bf16.msra.mxu0 %v2013
    %2042 = vmatprep.subr.bf16.mxu0 0
    %2043 = vmatpush1.bf16.msra.mxu0 %v2012
    %2044 = vmatprep.subr.bf16.mxu0 0
    %2045 = vmatpush2.bf16.msra.mxu0 0
    %2046 = vmatprep.subr.bf16.mxu0 0
    %2047 = vmatpush2.bf16.msra.mxu0 0
    %2048 = vmatprep.subr.bf16.mxu0 0
    %2049 = vmatpush2.bf16.msra.mxu0 0
    %2050 = vmatprep.subr.bf16.mxu0 0
    %2051 = vmatpush2.bf16.msra.mxu0 0
    %2052 = vmatprep.subr.bf16.mxu0 0
    %2053 = vmatpush2.bf16.msra.mxu0 0
    %2054 = vmatprep.subr.bf16.mxu0 0
    %2055 = vmatpush2.bf16.msra.mxu0 0
    %2056 = vmatprep.subr.bf16.mxu0 0
    %2057 = vmatpush2.bf16.msra.mxu0 0
    %2058 = vmatprep.subr.bf16.mxu0 0
    %2059 = vmatpush2.bf16.msra.mxu0 0
    %2060 = vmatprep.mubr.bf16.mxu0 0
    %2061 = vmatmul.mubr.bf16.gmra.mxu0 %v1961
    %v2062 = vpop.f32.mrf.mxu0
    %v2063 = vpop.f32.mrf.mxu0
    %v2064 = vpop.f32.mrf.mxu0
    %v2065 = vadd.f32 0.0, %v2064
    %v2066 = vpop.f32.mrf.mxu0
    %2067 = vmatprep.mubr.bf16.mxu0 0
    %2068 = vmatmul.mubr.bf16.gmra.mxu0 %v1962
    %v2069 = vpop.f32.mrf.mxu0
    %v2070 = vpop.f32.mrf.mxu0
    %v2071 = vpop.f32.mrf.mxu0
    %v2072 = vadd.f32 0.0, %v2071
    %v2073 = vpop.f32.mrf.mxu0
    %2074 = vdwg.mxu0
    %v2075 = vadd.f32 %v1772, %v2065
    %v2076 = vadd.f32 %v1774, %v2072
    %v2077 = vld [vmem:[%s12] sm:$0x1]
    %v2078 = vmul.f32 %v2075, %v2075
    %v2079 = vmul.f32 %v2076, %v2076
    %v2080 = vsel %vm184, %v2078, 0.0
    %2081 = vadd.xlane.f32.xlu0 %v2080
    %v2082 = vpop.xlane.xlu0 %2081
    %v2083 = vsel %vm184, %v2079, 0.0
    %2084 = vadd.xlane.f32.xlu0 %v2083
    %v2085 = vpop.xlane.xlu0 %2084
    %v2086 = vmul.f32 %v2082, %v197
    %v2087 = vmul.f32 %v2085, %v197
    %v2088 = vadd.f32 %v2086, 1e-06
    %v2089 = vadd.f32 %v2087, 1e-06
    %v2090 = vrsqrt.pop %v2088
    %v2091 = vrsqrt.pop %v2089
    %v2092 = vmul.f32 %v2075, %v2090
    %v2093 = vmul.f32 %v2076, %v2091
    %v2095 = vlaneseq
    %v2096 = vshrl.u32 %v2095, 7
    %v2097 = vsub.s32 0, %v2096
    %v2098 = vrot.slane %v2077, %v2097
    %v2100 = vmul.f32 %v2092, %v2098
    %v2101 = vmul.f32 %v2093, %v2098
    %v2102 = vpack.c.bf16 %v2101, %v2100
    %v2103 = vld [vmem:[%s13] sm:$0xf]
    %v2104 = vld [vmem:[%s13 + $0x4] sm:$0xf]
    %v2105 = vld [vmem:[%s13 + $0x8] sm:$0xf]
    %v2106 = vld [vmem:[%s13 + $0xc] sm:$0xf]
    %v2107 = vld [vmem:[%s13 + $0x10] sm:$0xf]
    %v2108 = vld [vmem:[%s13 + $0x14] sm:$0xf]
    %v2109 = vld [vmem:[%s13 + $0x18] sm:$0xf]
    %v2110 = vld [vmem:[%s13 + $0x1c] sm:$0xf]
    %v2119 = vunpack.c.l.b16 %v2103
    %v2120 = vunpack.c.l.b16 %v2104
    %v2121 = vunpack.c.l.b16 %v2105
    %v2122 = vunpack.c.l.b16 %v2106
    %v2123 = vunpack.c.l.b16 %v2107
    %v2124 = vunpack.c.l.b16 %v2108
    %v2125 = vunpack.c.l.b16 %v2109
    %v2126 = vunpack.c.l.b16 %v2110
    %v2127 = vpack.c.b16 %v2120, %v2119
    %v2128 = vpack.c.b16 %v2122, %v2121
    %v2129 = vpack.c.b16 %v2124, %v2123
    %v2130 = vpack.c.b16 %v2126, %v2125
    %v2136 = vsel %vm184, %v2102, 0
    %2138 = vmatprep.subr.bf16.mxu0 0
    %2139 = vmatpush1.bf16.msra.mxu0 0
    %2140 = vmatprep.subr.bf16.mxu0 0
    %2141 = vmatpush1.bf16.msra.mxu0 0
    %2142 = vmatprep.subr.bf16.mxu0 0
    %2143 = vmatpush1.bf16.msra.mxu0 0
    %2144 = vmatprep.subr.bf16.mxu0 0
    %2145 = vmatpush1.bf16.msra.mxu0 0
    %2146 = vmatprep.subr.bf16.mxu0 0
    %2147 = vmatpush1.bf16.msra.mxu0 %v2130
    %2148 = vmatprep.subr.bf16.mxu0 0
    %2149 = vmatpush1.bf16.msra.mxu0 %v2129
    %2150 = vmatprep.subr.bf16.mxu0 0
    %2151 = vmatpush1.bf16.msra.mxu0 %v2128
    %2152 = vmatprep.subr.bf16.mxu0 0
    %2153 = vmatpush1.bf16.msra.mxu0 %v2127
    %2154 = vmatprep.subr.bf16.mxu0 0
    %2155 = vmatpush2.bf16.msra.mxu0 0
    %2156 = vmatprep.subr.bf16.mxu0 0
    %2157 = vmatpush2.bf16.msra.mxu0 0
    %2158 = vmatprep.subr.bf16.mxu0 0
    %2159 = vmatpush2.bf16.msra.mxu0 0
    %2160 = vmatprep.subr.bf16.mxu0 0
    %2161 = vmatpush2.bf16.msra.mxu0 0
    %2162 = vmatprep.subr.bf16.mxu0 0
    %2163 = vmatpush2.bf16.msra.mxu0 0
    %2164 = vmatprep.subr.bf16.mxu0 0
    %2165 = vmatpush2.bf16.msra.mxu0 0
    %2166 = vmatprep.subr.bf16.mxu0 0
    %2167 = vmatpush2.bf16.msra.mxu0 0
    %2168 = vmatprep.subr.bf16.mxu0 0
    %2169 = vmatpush2.bf16.msra.mxu0 0
    %2170 = vmatprep.mubr.bf16.mxu0 0
    %2171 = vmatmul.mubr.bf16.gmra.mxu0 %v2136
    %v2172 = vpop.f32.mrf.mxu0
    %v2173 = vadd.f32 0.0, %v2172
    %v2174 = vpop.f32.mrf.mxu0
    %v2175 = vpop.f32.mrf.mxu0
    %v2176 = vadd.f32 0.0, %v2175
    %v2177 = vpop.f32.mrf.mxu0
    %2178 = vdwg.mxu0
    %2179 = vst [vmem:[#allocation2] sm:$0xff] %v2173
    %2180 = vst [vmem:[#allocation2 + $0x8] sm:$0xff] %v2176
    // Predicated region
    $region58: #{qwen_with_image_prefix.1} parent=1 // pred_check
      _
    $region59: #{qwen_with_image_prefix.1} parent=1 // pred_check_branch
      %2182 = sbr.rel (0) target = $region61
    $region60: #{qwen_with_image_prefix.1} parent=1 // pred_region
      %s2184 = ssub.s32 256, 256
      %2185 = vsyncadd [#allocation3], %s2184
      %s2186 = sshll.u32 [#allocation2], 4
      %s2187 = int_to_ptr.vmem [resolvable:$true] %s2186
      %2192 = dma.vmem_to_hbm [thread:$0]  %s2187, 256, %s14, [#allocation3], 128, 128, 8
    $region61: #{qwen_with_image_prefix.1} parent=1 // pred_fallthru
      _
    // Predicated region
    $region62: #{qwen_with_image_prefix.1} parent=1 // pred_check
      _
    $region63: #{qwen_with_image_prefix.1} parent=1 // pred_check_branch
      %2194 = sbr.rel (0) target = $region65
    $region64: #{qwen_with_image_prefix.1} parent=1 // pred_region
      %2195 = dma.done [#allocation3], 256
    $region65: #{qwen_with_image_prefix.1} parent=1 // pred_fallthru
      _
    %2196 = vsyncpa [#allocation3], 1

</llo_original>
